<compile_context>
chip_gen: v5e
topology: v5e:2x2
jax: 0.10.0
libtpu: 0.0.40
codegen_flags: <defaults>
</compile_context>

<pallas_src>
import math
import functools

import jax
import jax.numpy as jnp
from jax.experimental import pallas as pl
from jax.experimental.pallas import tpu as pltpu


# ----------------------------------------------------------------------------
# Deterministic parameter init: gaussian orthogonal random projection matrix
# (same construction as gaussian_orthogonal_random_matrix, scaling=0).
# ----------------------------------------------------------------------------
def gaussian_orthogonal_random_matrix(key, nb_rows, nb_columns, scaling=0):
    nb_full_blocks = nb_rows // nb_columns
    keys = jax.random.split(key, nb_full_blocks + 2)
    blocks = []
    for i in range(nb_full_blocks):
        unstructured = jax.random.normal(keys[i], (nb_columns, nb_columns),
                                         dtype=jnp.float32)
        q_mat, _ = jnp.linalg.qr(unstructured)
        blocks.append(q_mat.T)
    remaining = nb_rows - nb_full_blocks * nb_columns
    if remaining > 0:
        unstructured = jax.random.normal(keys[nb_full_blocks],
                                         (nb_columns, nb_columns),
                                         dtype=jnp.float32)
        q_mat, _ = jnp.linalg.qr(unstructured)
        blocks.append(q_mat.T[:remaining])
    final_matrix = jnp.concatenate(blocks, axis=0)
    if scaling == 0:
        multiplier = jnp.linalg.norm(
            jax.random.normal(keys[-1], (nb_rows, nb_columns),
                              dtype=jnp.float32), axis=1)
    elif scaling == 1:
        multiplier = math.sqrt(float(nb_columns)) * jnp.ones((nb_rows,),
                                                             jnp.float32)
    else:
        raise ValueError(f"Invalid scaling {scaling}")
    return multiplier[:, None] * final_matrix


# ----------------------------------------------------------------------------
# Pallas kernel: per grid step, process G whole (n, d) heads, batched:
#   q' = softmax_kernel(q, is_query=True)
#   k' = softmax_kernel(k, is_query=False)
#   out = linear_attention(q', k', v)
# ----------------------------------------------------------------------------
def _fast_attention_kernel(q_ref, k_ref, v_ref, projt_ref, o_ref, *,
                           ln_ratio, ratio_eps, diag_scale, m_real, mm_dtype):
    G, n, d = q_ref.shape
    M = projt_ref.shape[1]          # lane-padded feature count
    e = v_ref.shape[2]

    # Pre-scaled (normalizer folded in) and pre-transposed projection: (d, M).
    # Kept f32: its error would be exponentiated.
    projt = projt_ref[...]

    if m_real != M:
        col_mask = jax.lax.broadcasted_iota(jnp.int32, (1, 1, M), 2) < m_real
    else:
        col_mask = None

    # ---- K branch first (batched over all G heads): reduce to context_ext ----
    k = k_ref[...].astype(jnp.float32)                               # (G, n, d)
    kd = jnp.dot(k.reshape(G * n, d), projt,
                 preferred_element_type=jnp.float32).reshape(G, n, M)
    k_diag = jnp.sum(k * k, axis=-1, keepdims=True) * diag_scale     # (G, n, 1)
    kd_m = kd if col_mask is None else jnp.where(col_mask, kd, -jnp.inf)
    k_max = jnp.max(jnp.max(kd_m, axis=-1, keepdims=True),
                    axis=-2, keepdims=True)                          # (G, 1, 1)
    k_prime = jnp.exp(kd - k_diag - k_max + ln_ratio) + ratio_eps    # (G, n, M)
    if col_mask is not None:
        k_prime = jnp.where(col_mask, k_prime, 0.0)

    # Append a ones column to v so k'^T @ [v | 1] yields context AND k_sum in
    # one MXU pass; the denominator then falls out of the output matmul below.
    v = v_ref[...].astype(jnp.float32)                               # (G, n, e)
    v_ext = jnp.concatenate([v, jnp.ones((G, n, 1), jnp.float32)], axis=-1)
    context_ext = jnp.einsum('gnm,gne->gme',
                             k_prime.astype(mm_dtype), v_ext.astype(mm_dtype),
                             preferred_element_type=jnp.float32)     # (G, M, e+1)
    context_ext = context_ext.astype(mm_dtype)

    # ---- Q branch (batched) --------------------------------------------------
    q = q_ref[...].astype(jnp.float32)                               # (G, n, d)
    qd = jnp.dot(q.reshape(G * n, d), projt,
                 preferred_element_type=jnp.float32).reshape(G, n, M)
    q_diag = jnp.sum(q * q, axis=-1, keepdims=True) * diag_scale
    qd_m = qd if col_mask is None else jnp.where(col_mask, qd, -jnp.inf)
    q_max = jnp.max(qd_m, axis=-1, keepdims=True)                    # (G, n, 1)
    # Padded q' columns stay unmasked: they only multiply the zeroed padded
    # rows of context_ext, so they contribute nothing to output or denominator.
    q_prime = jnp.exp(qd - q_diag - q_max + ln_ratio) + ratio_eps    # (G, n, M)

    out_ext = jnp.einsum('gnm,gme->gne',
                         q_prime.astype(mm_dtype), context_ext,
                         preferred_element_type=jnp.float32)         # (G, n, e+1)
    d_inv = pl.reciprocal(out_ext[..., e:], approx=True)             # (G, n, 1)
    o_ref[...] = (out_ext[..., :e] * d_inv).astype(o_ref.dtype)


def _vmem_capacity_bytes():
    """Physical VMEM per TensorCore; conservative 64 MiB (v7x) fallback."""
    try:
        return int(pltpu.get_tpu_info().vmem_capacity_bytes)
    except Exception:
        return 64 << 20


def _choose_group_size(bh, n, d, e, m_pad, vmem_budget_bytes):
    """Heads per grid step: fit the per-step working set in the VMEM budget,
    amortize the ~0.35us/step pipeline overhead, and prefer an even number of
    grid steps so v7x can shard the parallel axis over its two TensorCores."""
    per_head = 4 * (2 * (2 * n * d + n * e)      # q,k,v tiles (double-buffered)
                    + 3 * n * m_pad              # kd/k' then qd/q' (+ exp temp)
                    + m_pad * (e + 1)            # extended context
                    + 2 * 2 * n * e)             # output tile (double-buffered)
    cap = max(1, vmem_budget_bytes // max(per_head, 1))
    target = min(cap, 64)
    divisors = [g for g in range(1, bh + 1) if bh % g == 0 and g <= target]
    if not divisors:
        return 1
    even_grid = [g for g in divisors if (bh // g) % 2 == 0]
    return max(even_grid) if even_grid else max(divisors)


def fast_attention(q, k, v, projection_matrix, *, group_size=None,
                   use_bf16_matmul=True):
    """q, k: (b, h, n, d); v: (b, h, n, e); projection_matrix: (m, d).

    use_bf16_matmul only affects the two POST-exponential matmuls
    (k'^T @ [v|1] and q' @ context_ext); the projection matmuls stay f32.
    """
    b, h, n, d = q.shape
    e = v.shape[-1]
    m = projection_matrix.shape[0]
    bh = b * h
    assert n % 8 == 0, "sequence length must be a multiple of 8 (sublane tile)"

    # Host-side prep: pre-scale (normalizer folded in), pre-transpose,
    # lane-pad the projection with zero columns.
    m_pad = 128 * pl.cdiv(m, 128)
    normalizer = float(d) ** -0.25
    projt = (projection_matrix.astype(jnp.float32) * normalizer).T    # (d, m)
    if m_pad != m:
        projt = jnp.pad(projt, ((0, 0), (0, m_pad - m)))               # (d, m_pad)

    # Generation-aware VMEM budgeting (v7x: 64 MiB/TC vs 128 MiB on v5e/v6e).
    vmem_cap = _vmem_capacity_bytes()
    ws_budget = max(8 << 20, min(24 << 20, vmem_cap // 4))
    vmem_limit = int(min(vmem_cap * 3 // 4, 100 << 20))

    if group_size is None:
        group_size = _choose_group_size(bh, n, d, e, m_pad, ws_budget)
    G = group_size
    assert bh % G == 0, f"group_size {G} must divide b*h = {bh}"
    n_groups = bh // G

    qf = q.reshape(bh, n, d)
    kf = k.reshape(bh, n, d)
    vf = v.reshape(bh, n, e)

    ratio = float(m) ** -0.5
    kernel = functools.partial(
        _fast_attention_kernel,
        ln_ratio=math.log(ratio),
        ratio_eps=ratio * 1e-4,
        diag_scale=0.5 * normalizer * normalizer,
        m_real=m,
        mm_dtype=jnp.bfloat16 if use_bf16_matmul else jnp.float32,
    )

    cost = pl.CostEstimate(
        flops=2 * bh * n * (2 * d * m_pad + 2 * m_pad * (e + 1)),
        transcendentals=2 * bh * n * m_pad,
        bytes_accessed=4 * (2 * bh * n * d + 2 * bh * n * e
                            + n_groups * d * m_pad),
    )

    out = pl.pallas_call(
        kernel,
        out_shape=jax.ShapeDtypeStruct((bh, n, e), q.dtype),
        grid_spec=pltpu.PrefetchScalarGridSpec(
            num_scalar_prefetch=0,
            grid=(n_groups,),
            in_specs=[
                pl.BlockSpec((G, n, d), lambda i: (i, 0, 0)),
                pl.BlockSpec((G, n, d), lambda i: (i, 0, 0)),
                pl.BlockSpec((G, n, e), lambda i: (i, 0, 0)),
                pl.BlockSpec((d, m_pad), lambda i: (0, 0)),
            ],
            out_specs=pl.BlockSpec((G, n, e), lambda i: (i, 0, 0)),
        ),
        compiler_params=pltpu.CompilerParams(
            dimension_semantics=("parallel",),
            vmem_limit_bytes=vmem_limit),
        cost_estimate=cost,
    )(qf, kf, vf, projt)

    # Output is already in natural (b*h, n, e) order: no un-shuffle transpose,
    # so the kernel's HBM write is the only output traffic.
    return out.reshape(b, h, n, e)


# ----------------------------------------------------------------------------
# Pure-JAX reference (mirrors softmax_kernel + linear_attention) for checking.
# ----------------------------------------------------------------------------
def _reference(q, k, v, proj):
    d = q.shape[-1]
    m = proj.shape[0]
    normalizer = float(d) ** -0.25
    ratio = float(m) ** -0.5
    eps = 1e-4

    qd = jnp.einsum('bhnd,md->bhnm', normalizer * q, proj)
    kd = jnp.einsum('bhnd,md->bhnm', normalizer * k, proj)
    q_diag = jnp.sum(q ** 2, -1, keepdims=True) / 2.0 * normalizer ** 2
    k_diag = jnp.sum(k ** 2, -1, keepdims=True) / 2.0 * normalizer ** 2
    q_p = ratio * (jnp.exp(qd - q_diag - jnp.max(qd, -1, keepdims=True)) + eps)
    k_p = ratio * (jnp.exp(kd - k_diag -
                           jnp.max(kd, axis=(-1, -2), keepdims=True)) + eps)

    k_sum = jnp.sum(k_p, axis=-2)
    d_inv = 1.0 / jnp.einsum('bhnm,bhm->bhn', q_p, k_sum)
    ctx = jnp.einsum('bhnm,bhne->bhme', k_p, v)
    return jnp.einsum('bhme,bhnm,bhn->bhne', ctx, q_p, d_inv)


if __name__ == "__main__":
    # Small shapes consistent with the module's (b, h, n, dim_heads) inputs.
    b, h, n, dim_heads = 2, 2, 64, 32
    nb_features = int(dim_heads * math.log(dim_heads))  # default in __init__ (=110)

    key = jax.random.PRNGKey(0)
    kq, kk, kv, kp = jax.random.split(key, 4)
    q = jax.random.normal(kq, (b, h, n, dim_heads), dtype=jnp.float32)
    k = jax.random.normal(kk, (b, h, n, dim_heads), dtype=jnp.float32)
    v = jax.random.normal(kv, (b, h, n, dim_heads), dtype=jnp.float32)

    projection_matrix = gaussian_orthogonal_random_matrix(
        kp, nb_features, dim_heads, scaling=0)

    ref = jax.block_until_ready(_reference(q, k, v, projection_matrix))

    # Exact path (f32 matmuls everywhere; only the approx reciprocal differs).
    out_f32 = jax.block_until_ready(
        fast_attention(q, k, v, projection_matrix, use_bf16_matmul=False))
    assert out_f32.shape == (b, h, n, dim_heads)
    assert jnp.allclose(out_f32, ref, rtol=1e-2, atol=1e-4), (
        "f32 path mismatch vs reference, max abs diff = "
        f"{float(jnp.max(jnp.abs(out_f32 - ref)))}")

    # Default fast path: bf16 MXU for the post-exponential matmuls only.
    out = jax.block_until_ready(fast_attention(q, k, v, projection_matrix))
    assert out.shape == (b, h, n, dim_heads)
    assert jnp.allclose(out, ref, rtol=5e-2, atol=5e-3), (
        "bf16 path mismatch vs reference, max abs diff = "
        f"{float(jnp.max(jnp.abs(out - ref)))}")

    print("KERNEL_OK")
</pallas_src>

<mosaic_0001>
module attributes {stable_mosaic.version = 11 : i64} {
  func.func @_fast_attention_kernel(%arg0: i32, %arg1: memref<2x64x32xf32, #tpu.memory_space<vmem>>, %arg2: memref<2x64x32xf32, #tpu.memory_space<vmem>>, %arg3: memref<2x64x32xf32, #tpu.memory_space<vmem>>, %arg4: memref<32x128xf32, #tpu.memory_space<vmem>>, %arg5: memref<2x64x32xf32, #tpu.memory_space<vmem>>) attributes {dimension_semantics = [#tpu.dimension_semantics<parallel>], iteration_bounds = array<i64: 2>, scalar_prefetch = 0 : i64, scratch_operands = 0 : i64, tpu.core_type = #tpu.core_type<tc>, window_params = [{transform_indices = @transform_0, window_bounds = array<i64: 2, 64, 32>}, {transform_indices = @transform_1, window_bounds = array<i64: 2, 64, 32>}, {transform_indices = @transform_2, window_bounds = array<i64: 2, 64, 32>}, {pipeline_mode = #tpu.pipeline_mode<synchronous>, transform_indices = @transform_3, window_bounds = array<i64: 32, 128>}, {transform_indices = @transform_4, window_bounds = array<i64: 2, 64, 32>}]} {
    %c0 = arith.constant 0 : index
    %c0_0 = arith.constant 0 : index
    %0 = vector.load %arg4[%c0, %c0_0] : memref<32x128xf32, #tpu.memory_space<vmem>>, vector<32x128xf32>
    %1 = tpu.iota {dimensions = array<i32: 2>} : vector<1x1x128xi32>
    %c110_i32 = arith.constant 110 : i32
    %2 = vector.broadcast %c110_i32 : i32 to vector<1x1x128xi32>
    %3 = arith.cmpi slt, %1, %2 : vector<1x1x128xi32>
    %c0_1 = arith.constant 0 : index
    %c0_2 = arith.constant 0 : index
    %c0_3 = arith.constant 0 : index
    %4 = vector.load %arg2[%c0_1, %c0_2, %c0_3] : memref<2x64x32xf32, #tpu.memory_space<vmem>>, vector<2x64x32xf32>
    %5 = vector.shape_cast %4 : vector<2x64x32xf32> to vector<128x32xf32>
    %cst = arith.constant dense<0.000000e+00> : vector<128x128xf32>
    %6 = tpu.matmul %5, %0, %cst {dimension_numbers = #tpu.dot_dimension_numbers<[1], [0], [0], [1], [0, 0, 1, 1], [], []>} : vector<128x32xf32>, vector<32x128xf32>, vector<128x128xf32> -> vector<128x128xf32>
    %7 = vector.shape_cast %6 : vector<128x128xf32> to vector<2x64x128xf32>
    %8 = arith.mulf %4, %4 : vector<2x64x32xf32>
    %cst_4 = arith.constant dense<0.000000e+00> : vector<2x64xf32>
    %9 = vector.multi_reduction <add>, %8, %cst_4 [2] : vector<2x64x32xf32> to vector<2x64xf32>
    %10 = vector.shape_cast %9 : vector<2x64xf32> to vector<2x64x1xf32>
    %cst_5 = arith.constant 0.0883883461 : f32
    %11 = vector.broadcast %cst_5 : f32 to vector<2x64x1xf32>
    %12 = arith.mulf %10, %11 : vector<2x64x1xf32>
    %cst_6 = arith.constant 0xFF800000 : f32
    %13 = vector.shape_cast %3 : vector<1x1x128xi1> to vector<1x1x128xi1>
    %14 = vector.broadcast %13 : vector<1x1x128xi1> to vector<2x64x128xi1>
    %15 = vector.broadcast %cst_6 : f32 to vector<2x64x128xf32>
    %16 = arith.select %14, %7, %15 : vector<2x64x128xi1>, vector<2x64x128xf32>
    %cst_7 = arith.constant dense<0xFF800000> : vector<2x64xf32>
    %17 = vector.multi_reduction <maximumf>, %16, %cst_7 [2] : vector<2x64x128xf32> to vector<2x64xf32>
    %18 = vector.shape_cast %17 : vector<2x64xf32> to vector<2x64x1xf32>
    %cst_8 = arith.constant dense<0xFF800000> : vector<2x1xf32>
    %19 = vector.multi_reduction <maximumf>, %18, %cst_8 [1] : vector<2x64x1xf32> to vector<2x1xf32>
    %20 = vector.shape_cast %19 : vector<2x1xf32> to vector<2x1x1xf32>
    %21 = vector.broadcast %12 : vector<2x64x1xf32> to vector<2x64x128xf32>
    %22 = arith.subf %7, %21 : vector<2x64x128xf32>
    %23 = vector.broadcast %20 : vector<2x1x1xf32> to vector<2x64x128xf32>
    %24 = arith.subf %22, %23 : vector<2x64x128xf32>
    %cst_9 = arith.constant -2.35024023 : f32
    %25 = vector.broadcast %cst_9 : f32 to vector<2x64x128xf32>
    %26 = arith.addf %24, %25 : vector<2x64x128xf32>
    %27 = math.exp %26 : vector<2x64x128xf32>
    %cst_10 = arith.constant 9.53462586E-6 : f32
    %28 = vector.broadcast %cst_10 : f32 to vector<2x64x128xf32>
    %29 = arith.addf %27, %28 : vector<2x64x128xf32>
    %cst_11 = arith.constant 0.000000e+00 : f32
    %30 = vector.shape_cast %3 : vector<1x1x128xi1> to vector<1x1x128xi1>
    %31 = vector.broadcast %30 : vector<1x1x128xi1> to vector<2x64x128xi1>
    %32 = vector.broadcast %cst_11 : f32 to vector<2x64x128xf32>
    %33 = arith.select %31, %29, %32 : vector<2x64x128xi1>, vector<2x64x128xf32>
    %c0_12 = arith.constant 0 : index
    %c0_13 = arith.constant 0 : index
    %c0_14 = arith.constant 0 : index
    %34 = vector.load %arg3[%c0_12, %c0_13, %c0_14] : memref<2x64x32xf32, #tpu.memory_space<vmem>>, vector<2x64x32xf32>
    %cst_15 = arith.constant 1.000000e+00 : f32
    %35 = vector.broadcast %cst_15 : f32 to vector<2x64x1xf32>
    %36 = tpu.concatenate %34, %35 in 2 : vector<2x64x32xf32>, vector<2x64x1xf32> -> vector<2x64x33xf32>
    "tpu.trace_start"() <{level = 10 : i32, message = "gnm,gne->gme"}> : () -> ()
    %cst_16 = arith.constant dense<0.000000e+00> : vector<2x128x33xf32>
    %37 = tpu.matmul %33, %36, %cst_16 {dimension_numbers = #tpu.dot_dimension_numbers<[1], [1], [2], [2], [0, 0, 0, 2, 1, 2], [0], [0]>} : vector<2x64x128xf32>, vector<2x64x33xf32>, vector<2x128x33xf32> -> vector<2x128x33xf32>
    "tpu.trace_stop"() : () -> ()
    %c0_17 = arith.constant 0 : index
    %c0_18 = arith.constant 0 : index
    %c0_19 = arith.constant 0 : index
    %38 = vector.load %arg1[%c0_17, %c0_18, %c0_19] : memref<2x64x32xf32, #tpu.memory_space<vmem>>, vector<2x64x32xf32>
    %39 = vector.shape_cast %38 : vector<2x64x32xf32> to vector<128x32xf32>
    %cst_20 = arith.constant dense<0.000000e+00> : vector<128x128xf32>
    %40 = tpu.matmul %39, %0, %cst_20 {dimension_numbers = #tpu.dot_dimension_numbers<[1], [0], [0], [1], [0, 0, 1, 1], [], []>} : vector<128x32xf32>, vector<32x128xf32>, vector<128x128xf32> -> vector<128x128xf32>
    %41 = vector.shape_cast %40 : vector<128x128xf32> to vector<2x64x128xf32>
    %42 = arith.mulf %38, %38 : vector<2x64x32xf32>
    %cst_21 = arith.constant dense<0.000000e+00> : vector<2x64xf32>
    %43 = vector.multi_reduction <add>, %42, %cst_21 [2] : vector<2x64x32xf32> to vector<2x64xf32>
    %44 = vector.shape_cast %43 : vector<2x64xf32> to vector<2x64x1xf32>
    %cst_22 = arith.constant 0.0883883461 : f32
    %45 = vector.broadcast %cst_22 : f32 to vector<2x64x1xf32>
    %46 = arith.mulf %44, %45 : vector<2x64x1xf32>
    %cst_23 = arith.constant 0xFF800000 : f32
    %47 = vector.shape_cast %3 : vector<1x1x128xi1> to vector<1x1x128xi1>
    %48 = vector.broadcast %47 : vector<1x1x128xi1> to vector<2x64x128xi1>
    %49 = vector.broadcast %cst_23 : f32 to vector<2x64x128xf32>
    %50 = arith.select %48, %41, %49 : vector<2x64x128xi1>, vector<2x64x128xf32>
    %cst_24 = arith.constant dense<0xFF800000> : vector<2x64xf32>
    %51 = vector.multi_reduction <maximumf>, %50, %cst_24 [2] : vector<2x64x128xf32> to vector<2x64xf32>
    %52 = vector.shape_cast %51 : vector<2x64xf32> to vector<2x64x1xf32>
    %53 = vector.broadcast %46 : vector<2x64x1xf32> to vector<2x64x128xf32>
    %54 = arith.subf %41, %53 : vector<2x64x128xf32>
    %55 = vector.broadcast %52 : vector<2x64x1xf32> to vector<2x64x128xf32>
    %56 = arith.subf %54, %55 : vector<2x64x128xf32>
    %cst_25 = arith.constant -2.35024023 : f32
    %57 = vector.broadcast %cst_25 : f32 to vector<2x64x128xf32>
    %58 = arith.addf %56, %57 : vector<2x64x128xf32>
    %59 = math.exp %58 : vector<2x64x128xf32>
    %cst_26 = arith.constant 9.53462586E-6 : f32
    %60 = vector.broadcast %cst_26 : f32 to vector<2x64x128xf32>
    %61 = arith.addf %59, %60 : vector<2x64x128xf32>
    "tpu.trace_start"() <{level = 10 : i32, message = "gnm,gme->gne"}> : () -> ()
    %cst_27 = arith.constant dense<0.000000e+00> : vector<2x64x33xf32>
    %62 = tpu.matmul %61, %37, %cst_27 {dimension_numbers = #tpu.dot_dimension_numbers<[2], [1], [1], [2], [0, 0, 0, 1, 1, 2], [0], [0]>} : vector<2x64x128xf32>, vector<2x128x33xf32>, vector<2x64x33xf32> -> vector<2x64x33xf32>
    "tpu.trace_stop"() : () -> ()
    %63 = vector.extract_strided_slice %62 {offsets = [0, 0, 32], sizes = [2, 64, 1], strides = [1, 1, 1]} : vector<2x64x33xf32> to vector<2x64x1xf32>
    %64 = tpu.reciprocal %63 {approx = true} : vector<2x64x1xf32> -> vector<2x64x1xf32>
    %65 = vector.extract_strided_slice %62 {offsets = [0, 0, 0], sizes = [2, 64, 32], strides = [1, 1, 1]} : vector<2x64x33xf32> to vector<2x64x32xf32>
    %66 = vector.broadcast %64 : vector<2x64x1xf32> to vector<2x64x32xf32>
    %67 = arith.mulf %65, %66 : vector<2x64x32xf32>
    %c0_28 = arith.constant 0 : index
    %c0_29 = arith.constant 0 : index
    %c0_30 = arith.constant 0 : index
    %68 = vector.load %arg5[%c0_28, %c0_29, %c0_30] : memref<2x64x32xf32, #tpu.memory_space<vmem>>, vector<2x64x32xf32>
    tpu.vector_store %arg5[%c0_28, %c0_29, %c0_30], %67 {strides = array<i32>} : memref<2x64x32xf32, #tpu.memory_space<vmem>>, vector<2x64x32xf32>,
    return
  }
  func.func @transform_0(%arg0: i32) -> (i32, i32, i32) {
    %c0_i32 = arith.constant 0 : i32
    %c0_i32_0 = arith.constant 0 : i32
    %c0_i32_1 = arith.constant 0 : i32
    return %arg0, %c0_i32, %c0_i32_0 : i32, i32, i32
  }
  func.func @transform_1(%arg0: i32) -> (i32, i32, i32) {
    %c0_i32 = arith.constant 0 : i32
    %c0_i32_0 = arith.constant 0 : i32
    %c0_i32_1 = arith.constant 0 : i32
    return %arg0, %c0_i32, %c0_i32_0 : i32, i32, i32
  }
  func.func @transform_2(%arg0: i32) -> (i32, i32, i32) {
    %c0_i32 = arith.constant 0 : i32
    %c0_i32_0 = arith.constant 0 : i32
    %c0_i32_1 = arith.constant 0 : i32
    return %arg0, %c0_i32, %c0_i32_0 : i32, i32, i32
  }
  func.func @transform_3(%arg0: i32) -> (i32, i32) {
    %c0_i32 = arith.constant 0 : i32
    %c0_i32_0 = arith.constant 0 : i32
    %c0_i32_1 = arith.constant 0 : i32
    return %c0_i32, %c0_i32_0 : i32, i32
  }
  func.func @transform_4(%arg0: i32) -> (i32, i32, i32) {
    %c0_i32 = arith.constant 0 : i32
    %c0_i32_0 = arith.constant 0 : i32
    %c0_i32_1 = arith.constant 0 : i32
    return %arg0, %c0_i32, %c0_i32_0 : i32, i32, i32
  }
}

</mosaic_0001>

<llo_original>
// kernel: tpu_custom_call.1
$region0: #{tpu_custom_call.1}
  #allocation0 [shape = 'u32[]', space=smem, size = 0x4, offset = 0x4, fixed_abs, tag = 'smem constant byte address 0x4 - core index']
  #allocation1 [shape = 'u32[72,128]{1,0:T(1,128)}', space=vmem, size = 0x9000, scoped, tag = 'internal scratch']
  %s0 = inlined_call_operand.vmem [shape: f32[4,64,32], index: 0, kind: input, shape index: {}]
  %s1 = inlined_call_operand.vmem [shape: f32[4,64,32], index: 1, kind: input, shape index: {}]
  %s2 = inlined_call_operand.vmem [shape: f32[4,64,32], index: 2, kind: input, shape index: {}]
  %s3 = inlined_call_operand.vmem [shape: f32[32,128], index: 3, kind: input, shape index: {}]
  %s4 = inlined_call_operand.vmem [shape: f32[4,64,32], index: 4, kind: output, shape index: {}]
  %s5 = sld [smem:[#allocation0]]
  $region49: #{tpu_custom_call.1} parent=0
    _
  %s7 = ssub.s32 1, %s5
  %s8 = scalar_select 0, %s7, %s5
  loop: start=0, step=1, limit=4
  $region2: #{tpu_custom_call.1} parent=0 // loop_pre_header
    _
  $region3: #{tpu_custom_call.1} parent=0 // loop_header
    %s10 = sphi 0, %s14
    %p11 = scmp.ge.s32.totalorder %s10, 4
    %s20 = sphi 0, %s22
    %s23 = sphi 0, %s20
    %s24 = sphi 0, %s23
    %s40 = sphi 0, %s24
    %s46 = sphi 0, %s48
    %s49 = sphi 0, %s46
    %s50 = sphi 0, %s49
    %s66 = sphi 0, %s50
    %s72 = sphi 0, %s74
    %s75 = sphi 0, %s72
    %s76 = sphi 0, %s75
    %s92 = sphi 0, %s76
    %s96 = sphi 0, %s96
    %s98 = sphi 0, %s96
    %s99 = sphi 0, %s98
    %s113 = sphi 0, %s99
    %s119 = sphi 0, %s121
    %s122 = sphi 0, %s119
    %s123 = sphi 0, %s122
    %s139 = sphi 0, %s123
  $region4: #{tpu_custom_call.1} parent=0 // loop_header_branch
    %13 = sbr.rel (%p11) target = $region8
  $region5: #{tpu_custom_call.1} parent=0 // loop_body
    %s15 = ssub.s32 %s10, 1
    %s16 = ssub.s32 %s10, 2
    %s17 = sadd.s32 %s10, 1
    %s18 = ssub.s32 %s10, %s17
    %p19 = scmp.eq.s32.totalorder %s18, 0
    %s21 = sadd.s32 %s20, 1
    %s22 = scalar_select %p19, %s20, %s21
    %p25 = pneg %p19
    %p26 = scmp.eq.s32.totalorder %s10, 1
    %p27 = por %p25, %p26
    %p28 = scmp.ne.s32.totalorder %s20, %s23
    %p29 = scmp.eq.s32.totalorder %s10, 0
    %p30 = por %p28, %p29
    %p31 = scmp.ne.s32.totalorder %s20, %s23
    %p32 = scmp.eq.s32.totalorder %s15, 1
    %p33 = por %p31, %p32
    %p34 = scmp.ne.s32.totalorder %s23, %s24
    %p35 = scmp.eq.s32.totalorder %s15, 0
    %p36 = por %p34, %p35
    %p37 = scmp.ne.s32.totalorder %s23, %s24
    %p38 = scmp.eq.s32.totalorder %s16, 1
    %p39 = por %p37, %p38
    %p41 = scmp.ne.s32.totalorder %s24, %s40
    %p42 = scmp.eq.s32.totalorder %s16, 0
    %p43 = por %p41, %p42
    %s44 = ssub.s32 %s10, %s17
    %p45 = scmp.eq.s32.totalorder %s44, 0
    %s47 = sadd.s32 %s46, 1
    %s48 = scalar_select %p45, %s46, %s47
    %p51 = pneg %p45
    %p52 = scmp.eq.s32.totalorder %s10, 1
    %p53 = por %p51, %p52
    %p54 = scmp.ne.s32.totalorder %s46, %s49
    %p55 = scmp.eq.s32.totalorder %s10, 0
    %p56 = por %p54, %p55
    %p57 = scmp.ne.s32.totalorder %s46, %s49
    %p58 = scmp.eq.s32.totalorder %s15, 1
    %p59 = por %p57, %p58
    %p60 = scmp.ne.s32.totalorder %s49, %s50
    %p61 = scmp.eq.s32.totalorder %s15, 0
    %p62 = por %p60, %p61
    %p63 = scmp.ne.s32.totalorder %s49, %s50
    %p64 = scmp.eq.s32.totalorder %s16, 1
    %p65 = por %p63, %p64
    %p67 = scmp.ne.s32.totalorder %s50, %s66
    %p68 = scmp.eq.s32.totalorder %s16, 0
    %p69 = por %p67, %p68
    %s70 = ssub.s32 %s10, %s17
    %p71 = scmp.eq.s32.totalorder %s70, 0
    %s73 = sadd.s32 %s72, 1
    %s74 = scalar_select %p71, %s72, %s73
    %p77 = pneg %p71
    %p78 = scmp.eq.s32.totalorder %s10, 1
    %p79 = por %p77, %p78
    %p80 = scmp.ne.s32.totalorder %s72, %s75
    %p81 = scmp.eq.s32.totalorder %s10, 0
    %p82 = por %p80, %p81
    %p83 = scmp.ne.s32.totalorder %s72, %s75
    %p84 = scmp.eq.s32.totalorder %s15, 1
    %p85 = por %p83, %p84
    %p86 = scmp.ne.s32.totalorder %s75, %s76
    %p87 = scmp.eq.s32.totalorder %s15, 0
    %p88 = por %p86, %p87
    %p89 = scmp.ne.s32.totalorder %s75, %s76
    %p90 = scmp.eq.s32.totalorder %s16, 1
    %p91 = por %p89, %p90
    %p93 = scmp.ne.s32.totalorder %s76, %s92
    %p94 = scmp.eq.s32.totalorder %s16, 0
    %p95 = por %p93, %p94
    %s97 = sadd.s32 %s96, 1
    %p100 = scmp.eq.s32.totalorder %s10, 1
    %p101 = scmp.ne.s32.totalorder %s96, %s98
    %p102 = scmp.eq.s32.totalorder %s10, 0
    %p103 = por %p101, %p102
    %p104 = scmp.ne.s32.totalorder %s96, %s98
    %p105 = scmp.eq.s32.totalorder %s15, 1
    %p106 = por %p104, %p105
    %p107 = scmp.ne.s32.totalorder %s98, %s99
    %p108 = scmp.eq.s32.totalorder %s15, 0
    %p109 = por %p107, %p108
    %p110 = scmp.ne.s32.totalorder %s98, %s99
    %p111 = scmp.eq.s32.totalorder %s16, 1
    %p112 = por %p110, %p111
    %p114 = scmp.ne.s32.totalorder %s99, %s113
    %p115 = scmp.eq.s32.totalorder %s16, 0
    %p116 = por %p114, %p115
    %s117 = ssub.s32 %s10, %s17
    %p118 = scmp.eq.s32.totalorder %s117, 0
    %s120 = sadd.s32 %s119, 1
    %s121 = scalar_select %p118, %s119, %s120
    %p124 = pneg %p118
    %p125 = scmp.eq.s32.totalorder %s10, 1
    %p126 = por %p124, %p125
    %p127 = scmp.ne.s32.totalorder %s119, %s122
    %p128 = scmp.eq.s32.totalorder %s10, 0
    %p129 = por %p127, %p128
    %p130 = scmp.ne.s32.totalorder %s119, %s122
    %p131 = scmp.eq.s32.totalorder %s15, 1
    %p132 = por %p130, %p131
    %p133 = scmp.ne.s32.totalorder %s122, %s123
    %p134 = scmp.eq.s32.totalorder %s15, 0
    %p135 = por %p133, %p134
    %p136 = scmp.ne.s32.totalorder %s122, %s123
    %p137 = scmp.eq.s32.totalorder %s16, 1
    %p138 = por %p136, %p137
    %p140 = scmp.ne.s32.totalorder %s123, %s139
    %p141 = scmp.eq.s32.totalorder %s16, 0
    %p142 = por %p140, %p141
    %p143 = scmp.le.s32.totalorder 1, %s10
    %p144 = scmp.lt.s32.totalorder %s10, 3
    %p145 = pnand %p143, %p144
    %p146 = pneg %p145
    // Predicated region
    $region9: #{tpu_custom_call.1} parent=5 // pred_check
      _
    $region10: #{tpu_custom_call.1} parent=5 // pred_check_branch
      %148 = sbr.rel (%p145) target = $region12
    $region11: #{tpu_custom_call.1} parent=5 // pred_region
      %s149 = ssub.s32 %s10, 1
      // Predicated region
      $region13: #{tpu_custom_call.1} parent=11 // pred_check
        %p150 = pneg %p109
      $region14: #{tpu_custom_call.1} parent=11 // pred_check_branch
        %152 = sbr.rel (%p150) target = $region16
      $region15: #{tpu_custom_call.1} parent=11 // pred_region
        _
      $region16: #{tpu_custom_call.1} parent=11 // pred_fallthru
        _
    $region12: #{tpu_custom_call.1} parent=5 // pred_fallthru
      _
    %p153 = scmp.lt.s32.totalorder %s10, 2
    // Predicated region
    $region17: #{tpu_custom_call.1} parent=5 // pred_check
      %p154 = pneg %p153
    $region18: #{tpu_custom_call.1} parent=5 // pred_check_branch
      %156 = sbr.rel (%p154) target = $region20
    $region19: #{tpu_custom_call.1} parent=5 // pred_region
      // Predicated region
      $region21: #{tpu_custom_call.1} parent=19 // pred_check
        %p157 = pneg %p30
      $region22: #{tpu_custom_call.1} parent=19 // pred_check_branch
        %159 = sbr.rel (%p157) target = $region24
      $region23: #{tpu_custom_call.1} parent=19 // pred_region
        %s160 = smul.u32 2, %s10
        %p161 = scmp.lt.s32.totalorder %s160, 3
        %s162 = scalar_select %p161, %s160, 3
        %s163 = smul.addr %s162, 8
        %s164 = smul.addr %s163, 8
        %s165 = scalar_lea.vmem %s0, %s164
        %s166 = smul.u32 2, %s10
      $region24: #{tpu_custom_call.1} parent=19 // pred_fallthru
        _
      // Predicated region
      $region25: #{tpu_custom_call.1} parent=19 // pred_check
        %p167 = pneg %p56
      $region26: #{tpu_custom_call.1} parent=19 // pred_check_branch
        %169 = sbr.rel (%p167) target = $region28
      $region27: #{tpu_custom_call.1} parent=19 // pred_region
        %s170 = smul.u32 2, %s10
        %p171 = scmp.lt.s32.totalorder %s170, 3
        %s172 = scalar_select %p171, %s170, 3
        %s173 = smul.addr %s172, 8
        %s174 = smul.addr %s173, 8
        %s175 = scalar_lea.vmem %s1, %s174
        %s176 = smul.u32 2, %s10
      $region28: #{tpu_custom_call.1} parent=19 // pred_fallthru
        _
      // Predicated region
      $region29: #{tpu_custom_call.1} parent=19 // pred_check
        %p177 = pneg %p82
      $region30: #{tpu_custom_call.1} parent=19 // pred_check_branch
        %179 = sbr.rel (%p177) target = $region32
      $region31: #{tpu_custom_call.1} parent=19 // pred_region
        %s180 = smul.u32 2, %s10
        %p181 = scmp.lt.s32.totalorder %s180, 3
        %s182 = scalar_select %p181, %s180, 3
        %s183 = smul.addr %s182, 8
        %s184 = smul.addr %s183, 8
        %s185 = scalar_lea.vmem %s2, %s184
        %s186 = smul.u32 2, %s10
      $region32: #{tpu_custom_call.1} parent=19 // pred_fallthru
        _
    $region20: #{tpu_custom_call.1} parent=5 // pred_fallthru
      _
    %p187 = scmp.le.s32.totalorder 1, %s10
    %p188 = scmp.lt.s32.totalorder %s10, 3
    %p189 = pnand %p187, %p188
    %p190 = pneg %p189
    // Predicated region
    $region33: #{tpu_custom_call.1} parent=5 // pred_check
      _
    $region34: #{tpu_custom_call.1} parent=5 // pred_check_branch
      %192 = sbr.rel (%p189) target = $region36
    $region35: #{tpu_custom_call.1} parent=5 // pred_region
      %s193 = ssub.s32 %s10, 1
      %s194 = smul.u32 2, %s15
      %p195 = scmp.lt.s32.totalorder %s194, 3
      %s196 = scalar_select %p195, %s194, 3
      %s197 = smul.addr %s196, 8
      %s198 = smul.addr %s197, 8
      %s199 = scalar_lea.vmem %s0, %s198
      %p200 = pneg %p36
      %p201 = pneg %p33
      %s202 = smul.u32 2, %s15
      %p203 = scmp.lt.s32.totalorder %s202, 3
      %s204 = scalar_select %p203, %s202, 3
      %s205 = smul.addr %s204, 8
      %s206 = smul.addr %s205, 8
      %s207 = scalar_lea.vmem %s1, %s206
      %p208 = pneg %p62
      %p209 = pneg %p59
      %s210 = smul.u32 2, %s15
      %p211 = scmp.lt.s32.totalorder %s210, 3
      %s212 = scalar_select %p211, %s210, 3
      %s213 = smul.addr %s212, 8
      %s214 = smul.addr %s213, 8
      %s215 = scalar_lea.vmem %s2, %s214
      %p216 = pneg %p88
      %p217 = pneg %p85
      %p218 = pneg %p109
      %p219 = pneg %p106
      %p220 = pneg %p135
      %p221 = pneg %p132
      %s222 = smul.u32 2, %s15
      %p223 = scmp.lt.s32.totalorder %s222, 3
      %s224 = scalar_select %p223, %s222, 3
      %s225 = smul.addr %s224, 8
      %s226 = smul.addr %s225, 8
      %s227 = scalar_lea.vmem %s4, %s226
      %s228 = smul.u32 2, %s15
      %p229 = scmp.lt.s32.totalorder %s228, 3
      %s230 = scalar_select %p229, %s228, 3
      %s231 = smul.addr %s230, 8
      %s232 = smul.addr %s231, 8
      %s233 = scalar_lea.vmem %s0, %s232
      %s234 = smul.u32 2, %s15
      %s235 = smul.u32 2, %s15
      %p236 = scmp.lt.s32.totalorder %s235, 3
      %s237 = scalar_select %p236, %s235, 3
      %s238 = smul.addr %s237, 8
      %s239 = smul.addr %s238, 8
      %s240 = scalar_lea.vmem %s1, %s239
      %s241 = smul.u32 2, %s15
      %s242 = smul.u32 2, %s15
      %p243 = scmp.lt.s32.totalorder %s242, 3
      %s244 = scalar_select %p243, %s242, 3
      %s245 = smul.addr %s244, 8
      %s246 = smul.addr %s245, 8
      %s247 = scalar_lea.vmem %s2, %s246
      %s248 = smul.u32 2, %s15
      %s249 = smul.u32 2, %s15
      %p250 = scmp.lt.s32.totalorder %s249, 3
      %s251 = scalar_select %p250, %s249, 3
      %s252 = smul.addr %s251, 8
      %s253 = smul.addr %s252, 8
      %s254 = scalar_lea.vmem %s4, %s253
      %s255 = smul.u32 2, %s15
      %v256 = vld [vmem:[%s3] sm:$0xff]
      %v257 = vld [vmem:[%s3 + $0x8] sm:$0xff]
      %v258 = vld [vmem:[%s3 + $0x10] sm:$0xff]
      %v259 = vld [vmem:[%s3 + $0x18] sm:$0xff]
      %v260 = vlaneseq
      %v261 = vand.u32 %v260, 127
      %vm262 = vcmp.lt.s32.totalorder %v261, 110
      %v263 = vld [vmem:[%s240] sm:$0xff]
      %v264 = vld [vmem:[%s240 + $0x8] sm:$0xff]
      %v265 = vld [vmem:[%s240 + $0x10] sm:$0xff]
      %v266 = vld [vmem:[%s240 + $0x18] sm:$0xff]
      %v267 = vld [vmem:[%s240 + $0x20] sm:$0xff]
      %v268 = vld [vmem:[%s240 + $0x28] sm:$0xff]
      %v269 = vld [vmem:[%s240 + $0x30] sm:$0xff]
      %v270 = vld [vmem:[%s240 + $0x38] sm:$0xff]
      %v271 = vld [vmem:[%s240 + $0x40] sm:$0xff]
      %v272 = vld [vmem:[%s240 + $0x48] sm:$0xff]
      %v273 = vld [vmem:[%s240 + $0x50] sm:$0xff]
      %v274 = vld [vmem:[%s240 + $0x58] sm:$0xff]
      %v275 = vld [vmem:[%s240 + $0x60] sm:$0xff]
      %v276 = vld [vmem:[%s240 + $0x68] sm:$0xff]
      %v277 = vld [vmem:[%s240 + $0x70] sm:$0xff]
      %v278 = vld [vmem:[%s240 + $0x78] sm:$0xff]
      %vm279 = vcmask 261120
      %v281 = vsel %vm279, %v263, 0
      %v284 = vsel %vm279, %v264, 0
      %v287 = vsel %vm279, %v265, 0
      %v290 = vsel %vm279, %v266, 0
      %v293 = vsel %vm279, %v267, 0
      %v296 = vsel %vm279, %v268, 0
      %v299 = vsel %vm279, %v269, 0
      %v302 = vsel %vm279, %v270, 0
      %v305 = vsel %vm279, %v271, 0
      %v308 = vsel %vm279, %v272, 0
      %v311 = vsel %vm279, %v273, 0
      %v314 = vsel %vm279, %v274, 0
      %v317 = vsel %vm279, %v275, 0
      %v320 = vsel %vm279, %v276, 0
      %v323 = vsel %vm279, %v277, 0
      %v326 = vsel %vm279, %v278, 0
      %328 = vmatpush.msra.mxu0 0.0
      %329 = vmatpush.msra.mxu0 0.0
      %330 = vmatpush.msra.mxu0 0.0
      %331 = vmatpush.msra.mxu0 0.0
      %332 = vmatpush.msra.mxu0 0.0
      %333 = vmatpush.msra.mxu0 0.0
      %334 = vmatpush.msra.mxu0 0.0
      %335 = vmatpush.msra.mxu0 0.0
      %336 = vmatpush.msra.mxu0 0.0
      %337 = vmatpush.msra.mxu0 0.0
      %338 = vmatpush.msra.mxu0 0.0
      %339 = vmatpush.msra.mxu0 0.0
      %340 = vmatpush.msra.mxu0 %v259
      %341 = vmatpush.msra.mxu0 %v258
      %342 = vmatpush.msra.mxu0 %v257
      %343 = vmatpush.msra.mxu0 %v256
      %344 = vmatmul.f32.gmra.mxu0 %v281
      %v345 = vpop.f32.mrf.mxu0
      %v346 = vadd.f32 0.0, %v345
      %347 = vmatmul.f32.gmra.mxu0 %v284
      %v348 = vpop.f32.mrf.mxu0
      %v349 = vadd.f32 0.0, %v348
      %350 = vmatmul.f32.gmra.mxu0 %v287
      %v351 = vpop.f32.mrf.mxu0
      %v352 = vadd.f32 0.0, %v351
      %353 = vmatmul.f32.gmra.mxu0 %v290
      %v354 = vpop.f32.mrf.mxu0
      %v355 = vadd.f32 0.0, %v354
      %356 = vmatmul.f32.gmra.mxu0 %v293
      %v357 = vpop.f32.mrf.mxu0
      %v358 = vadd.f32 0.0, %v357
      %359 = vmatmul.f32.gmra.mxu0 %v296
      %v360 = vpop.f32.mrf.mxu0
      %v361 = vadd.f32 0.0, %v360
      %362 = vmatmul.f32.gmra.mxu0 %v299
      %v363 = vpop.f32.mrf.mxu0
      %v364 = vadd.f32 0.0, %v363
      %365 = vmatmul.f32.gmra.mxu0 %v302
      %v366 = vpop.f32.mrf.mxu0
      %v367 = vadd.f32 0.0, %v366
      %368 = vmatmul.f32.gmra.mxu0 %v305
      %v369 = vpop.f32.mrf.mxu0
      %v370 = vadd.f32 0.0, %v369
      %371 = vmatmul.f32.gmra.mxu0 %v308
      %v372 = vpop.f32.mrf.mxu0
      %v373 = vadd.f32 0.0, %v372
      %374 = vmatmul.f32.gmra.mxu0 %v311
      %v375 = vpop.f32.mrf.mxu0
      %v376 = vadd.f32 0.0, %v375
      %377 = vmatmul.f32.gmra.mxu0 %v314
      %v378 = vpop.f32.mrf.mxu0
      %v379 = vadd.f32 0.0, %v378
      %380 = vmatmul.f32.gmra.mxu0 %v317
      %v381 = vpop.f32.mrf.mxu0
      %v382 = vadd.f32 0.0, %v381
      %383 = vmatmul.f32.gmra.mxu0 %v320
      %v384 = vpop.f32.mrf.mxu0
      %v385 = vadd.f32 0.0, %v384
      %386 = vmatmul.f32.gmra.mxu0 %v323
      %v387 = vpop.f32.mrf.mxu0
      %v388 = vadd.f32 0.0, %v387
      %389 = vmatmul.f32.gmra.mxu0 %v326
      %v390 = vpop.f32.mrf.mxu0
      %v391 = vadd.f32 0.0, %v390
      %392 = vdwg.mxu0
      %v393 = vmul.f32 %v263, %v263
      %v394 = vmul.f32 %v264, %v264
      %v395 = vmul.f32 %v265, %v265
      %v396 = vmul.f32 %v266, %v266
      %v397 = vmul.f32 %v267, %v267
      %v398 = vmul.f32 %v268, %v268
      %v399 = vmul.f32 %v269, %v269
      %v400 = vmul.f32 %v270, %v270
      %v401 = vmul.f32 %v271, %v271
      %v402 = vmul.f32 %v272, %v272
      %v403 = vmul.f32 %v273, %v273
      %v404 = vmul.f32 %v274, %v274
      %v405 = vmul.f32 %v275, %v275
      %v406 = vmul.f32 %v276, %v276
      %v407 = vmul.f32 %v277, %v277
      %v408 = vmul.f32 %v278, %v278
      %v409 = vsel %vm279, %v393, 0.0
      %410 = vadd.xlane.f32.xlu0 %v409
      %v411 = vpop.xlane.xlu0 %410
      %v412 = vsel %vm279, %v394, 0.0
      %413 = vadd.xlane.f32.xlu0 %v412
      %v414 = vpop.xlane.xlu0 %413
      %v415 = vsel %vm279, %v395, 0.0
      %416 = vadd.xlane.f32.xlu0 %v415
      %v417 = vpop.xlane.xlu0 %416
      %v418 = vsel %vm279, %v396, 0.0
      %419 = vadd.xlane.f32.xlu0 %v418
      %v420 = vpop.xlane.xlu0 %419
      %v421 = vsel %vm279, %v397, 0.0
      %422 = vadd.xlane.f32.xlu0 %v421
      %v423 = vpop.xlane.xlu0 %422
      %v424 = vsel %vm279, %v398, 0.0
      %425 = vadd.xlane.f32.xlu0 %v424
      %v426 = vpop.xlane.xlu0 %425
      %v427 = vsel %vm279, %v399, 0.0
      %428 = vadd.xlane.f32.xlu0 %v427
      %v429 = vpop.xlane.xlu0 %428
      %v430 = vsel %vm279, %v400, 0.0
      %431 = vadd.xlane.f32.xlu0 %v430
      %v432 = vpop.xlane.xlu0 %431
      %v433 = vsel %vm279, %v401, 0.0
      %434 = vadd.xlane.f32.xlu0 %v433
      %v435 = vpop.xlane.xlu0 %434
      %v436 = vsel %vm279, %v402, 0.0
      %437 = vadd.xlane.f32.xlu0 %v436
      %v438 = vpop.xlane.xlu0 %437
      %v439 = vsel %vm279, %v403, 0.0
      %440 = vadd.xlane.f32.xlu0 %v439
      %v441 = vpop.xlane.xlu0 %440
      %v442 = vsel %vm279, %v404, 0.0
      %443 = vadd.xlane.f32.xlu0 %v442
      %v444 = vpop.xlane.xlu0 %443
      %v445 = vsel %vm279, %v405, 0.0
      %446 = vadd.xlane.f32.xlu0 %v445
      %v447 = vpop.xlane.xlu0 %446
      %v448 = vsel %vm279, %v406, 0.0
      %449 = vadd.xlane.f32.xlu0 %v448
      %v450 = vpop.xlane.xlu0 %449
      %v451 = vsel %vm279, %v407, 0.0
      %452 = vadd.xlane.f32.xlu0 %v451
      %v453 = vpop.xlane.xlu0 %452
      %v454 = vsel %vm279, %v408, 0.0
      %455 = vadd.xlane.f32.xlu0 %v454
      %v456 = vpop.xlane.xlu0 %455
      %v457 = vmul.f32 %v411, 0.088388346
      %v458 = vmul.f32 %v414, 0.088388346
      %v459 = vmul.f32 %v417, 0.088388346
      %v460 = vmul.f32 %v420, 0.088388346
      %v461 = vmul.f32 %v423, 0.088388346
      %v462 = vmul.f32 %v426, 0.088388346
      %v463 = vmul.f32 %v429, 0.088388346
      %v464 = vmul.f32 %v432, 0.088388346
      %v465 = vmul.f32 %v435, 0.088388346
      %v466 = vmul.f32 %v438, 0.088388346
      %v467 = vmul.f32 %v441, 0.088388346
      %v468 = vmul.f32 %v444, 0.088388346
      %v469 = vmul.f32 %v447, 0.088388346
      %v470 = vmul.f32 %v450, 0.088388346
      %v471 = vmul.f32 %v453, 0.088388346
      %v472 = vmul.f32 %v456, 0.088388346
      %v473 = vsel %vm262, 1, 0
      %vm474 = vcmp.eq.s32.totalorder %v473, 1
      %v475 = vsel %vm474, %v346, -inf
      %v476 = vsel %vm474, %v349, -inf
      %v477 = vsel %vm474, %v352, -inf
      %v478 = vsel %vm474, %v355, -inf
      %v479 = vsel %vm474, %v358, -inf
      %v480 = vsel %vm474, %v361, -inf
      %v481 = vsel %vm474, %v364, -inf
      %v482 = vsel %vm474, %v367, -inf
      %v483 = vsel %vm474, %v370, -inf
      %v484 = vsel %vm474, %v373, -inf
      %v485 = vsel %vm474, %v376, -inf
      %v486 = vsel %vm474, %v379, -inf
      %v487 = vsel %vm474, %v382, -inf
      %v488 = vsel %vm474, %v385, -inf
      %v489 = vsel %vm474, %v388, -inf
      %v490 = vsel %vm474, %v391, -inf
      %491 = vmax.xlane.f32.xlu0 %v475
      %v492 = vpop.xlane.xlu0 %491
      %493 = vmax.xlane.f32.xlu0 %v476
      %v494 = vpop.xlane.xlu0 %493
      %495 = vmax.xlane.f32.xlu0 %v477
      %v496 = vpop.xlane.xlu0 %495
      %497 = vmax.xlane.f32.xlu0 %v478
      %v498 = vpop.xlane.xlu0 %497
      %499 = vmax.xlane.f32.xlu0 %v479
      %v500 = vpop.xlane.xlu0 %499
      %501 = vmax.xlane.f32.xlu0 %v480
      %v502 = vpop.xlane.xlu0 %501
      %503 = vmax.xlane.f32.xlu0 %v481
      %v504 = vpop.xlane.xlu0 %503
      %505 = vmax.xlane.f32.xlu0 %v482
      %v506 = vpop.xlane.xlu0 %505
      %507 = vmax.xlane.f32.xlu0 %v483
      %v508 = vpop.xlane.xlu0 %507
      %509 = vmax.xlane.f32.xlu0 %v484
      %v510 = vpop.xlane.xlu0 %509
      %511 = vmax.xlane.f32.xlu0 %v485
      %v512 = vpop.xlane.xlu0 %511
      %513 = vmax.xlane.f32.xlu0 %v486
      %v514 = vpop.xlane.xlu0 %513
      %515 = vmax.xlane.f32.xlu0 %v487
      %v516 = vpop.xlane.xlu0 %515
      %517 = vmax.xlane.f32.xlu0 %v488
      %v518 = vpop.xlane.xlu0 %517
      %519 = vmax.xlane.f32.xlu0 %v489
      %v520 = vpop.xlane.xlu0 %519
      %521 = vmax.xlane.f32.xlu0 %v490
      %v522 = vpop.xlane.xlu0 %521
      %v523 = vmax.f32 %v492, %v496
      %v524 = vmax.f32 %v494, %v498
      %v525 = vmax.f32 %v523, %v500
      %v526 = vmax.f32 %v524, %v502
      %v527 = vmax.f32 %v525, %v504
      %v528 = vmax.f32 %v526, %v506
      %v529 = vmax.f32 %v527, %v528
      %v530 = vrot.slane %v529, 4
      %v531 = vmax.f32 %v529, %v530
      %v532 = vrot.slane %v531, 2
      %v533 = vmax.f32 %v531, %v532
      %v534 = vrot.slane %v533, 1
      %v535 = vmax.f32 %v533, %v534
      %v536 = vmax.f32 %v508, %v512
      %v537 = vmax.f32 %v510, %v514
      %v538 = vmax.f32 %v536, %v516
      %v539 = vmax.f32 %v537, %v518
      %v540 = vmax.f32 %v538, %v520
      %v541 = vmax.f32 %v539, %v522
      %v542 = vmax.f32 %v540, %v541
      %v543 = vrot.slane %v542, 4
      %v544 = vmax.f32 %v542, %v543
      %v545 = vrot.slane %v544, 2
      %v546 = vmax.f32 %v544, %v545
      %v547 = vrot.slane %v546, 1
      %v548 = vmax.f32 %v546, %v547
      %v549 = vsub.f32 %v346, %v457
      %v550 = vsub.f32 %v349, %v458
      %v551 = vsub.f32 %v352, %v459
      %v552 = vsub.f32 %v355, %v460
      %v553 = vsub.f32 %v358, %v461
      %v554 = vsub.f32 %v361, %v462
      %v555 = vsub.f32 %v364, %v463
      %v556 = vsub.f32 %v367, %v464
      %v557 = vsub.f32 %v370, %v465
      %v558 = vsub.f32 %v373, %v466
      %v559 = vsub.f32 %v376, %v467
      %v560 = vsub.f32 %v379, %v468
      %v561 = vsub.f32 %v382, %v469
      %v562 = vsub.f32 %v385, %v470
      %v563 = vsub.f32 %v388, %v471
      %v564 = vsub.f32 %v391, %v472
      %v565 = vsub.f32 %v549, %v535
      %v566 = vsub.f32 %v550, %v535
      %v567 = vsub.f32 %v551, %v535
      %v568 = vsub.f32 %v552, %v535
      %v569 = vsub.f32 %v553, %v535
      %v570 = vsub.f32 %v554, %v535
      %v571 = vsub.f32 %v555, %v535
      %v572 = vsub.f32 %v556, %v535
      %v573 = vsub.f32 %v557, %v548
      %v574 = vsub.f32 %v558, %v548
      %v575 = vsub.f32 %v559, %v548
      %v576 = vsub.f32 %v560, %v548
      %v577 = vsub.f32 %v561, %v548
      %v578 = vsub.f32 %v562, %v548
      %v579 = vsub.f32 %v563, %v548
      %v580 = vsub.f32 %v564, %v548
      %v581 = vadd.f32 %v565, -2.3502402
      %v582 = vadd.f32 %v566, -2.3502402
      %v583 = vadd.f32 %v567, -2.3502402
      %v584 = vadd.f32 %v568, -2.3502402
      %v585 = vadd.f32 %v569, -2.3502402
      %v586 = vadd.f32 %v570, -2.3502402
      %v587 = vadd.f32 %v571, -2.3502402
      %v588 = vadd.f32 %v572, -2.3502402
      %v589 = vadd.f32 %v573, -2.3502402
      %v590 = vadd.f32 %v574, -2.3502402
      %v591 = vadd.f32 %v575, -2.3502402
      %v592 = vadd.f32 %v576, -2.3502402
      %v593 = vadd.f32 %v577, -2.3502402
      %v594 = vadd.f32 %v578, -2.3502402
      %v595 = vadd.f32 %v579, -2.3502402
      %v596 = vadd.f32 %v580, -2.3502402
      %v597 = vmul.f32 %v581, 1.442695
      %v598 = vpow.pop %v597
      %v599 = vmul.f32 %v582, 1.442695
      %v600 = vpow.pop %v599
      %v601 = vmul.f32 %v583, 1.442695
      %v602 = vpow.pop %v601
      %v603 = vmul.f32 %v584, 1.442695
      %v604 = vpow.pop %v603
      %v605 = vmul.f32 %v585, 1.442695
      %v606 = vpow.pop %v605
      %v607 = vmul.f32 %v586, 1.442695
      %v608 = vpow.pop %v607
      %v609 = vmul.f32 %v587, 1.442695
      %v610 = vpow.pop %v609
      %v611 = vmul.f32 %v588, 1.442695
      %v612 = vpow.pop %v611
      %v613 = vmul.f32 %v589, 1.442695
      %v614 = vpow.pop %v613
      %v615 = vmul.f32 %v590, 1.442695
      %v616 = vpow.pop %v615
      %v617 = vmul.f32 %v591, 1.442695
      %v618 = vpow.pop %v617
      %v619 = vmul.f32 %v592, 1.442695
      %v620 = vpow.pop %v619
      %v621 = vmul.f32 %v593, 1.442695
      %v622 = vpow.pop %v621
      %v623 = vmul.f32 %v594, 1.442695
      %v624 = vpow.pop %v623
      %v625 = vmul.f32 %v595, 1.442695
      %v626 = vpow.pop %v625
      %v627 = vmul.f32 %v596, 1.442695
      %v628 = vpow.pop %v627
      %v629 = vadd.f32 %v598, 9.534626e-06
      %v630 = vadd.f32 %v600, 9.534626e-06
      %v631 = vadd.f32 %v602, 9.534626e-06
      %v632 = vadd.f32 %v604, 9.534626e-06
      %v633 = vadd.f32 %v606, 9.534626e-06
      %v634 = vadd.f32 %v608, 9.534626e-06
      %v635 = vadd.f32 %v610, 9.534626e-06
      %v636 = vadd.f32 %v612, 9.534626e-06
      %v637 = vadd.f32 %v614, 9.534626e-06
      %v638 = vadd.f32 %v616, 9.534626e-06
      %v639 = vadd.f32 %v618, 9.534626e-06
      %v640 = vadd.f32 %v620, 9.534626e-06
      %v641 = vadd.f32 %v622, 9.534626e-06
      %v642 = vadd.f32 %v624, 9.534626e-06
      %v643 = vadd.f32 %v626, 9.534626e-06
      %v644 = vadd.f32 %v628, 9.534626e-06
      %v645 = vsel %vm474, %v629, 0.0
      %v646 = vsel %vm474, %v630, 0.0
      %v647 = vsel %vm474, %v631, 0.0
      %v648 = vsel %vm474, %v632, 0.0
      %v649 = vsel %vm474, %v633, 0.0
      %v650 = vsel %vm474, %v634, 0.0
      %v651 = vsel %vm474, %v635, 0.0
      %v652 = vsel %vm474, %v636, 0.0
      %v653 = vsel %vm474, %v637, 0.0
      %v654 = vsel %vm474, %v638, 0.0
      %v655 = vsel %vm474, %v639, 0.0
      %v656 = vsel %vm474, %v640, 0.0
      %v657 = vsel %vm474, %v641, 0.0
      %v658 = vsel %vm474, %v642, 0.0
      %v659 = vsel %vm474, %v643, 0.0
      %v660 = vsel %vm474, %v644, 0.0
      %v661 = vld [vmem:[%s247] sm:$0xff]
      %v662 = vld [vmem:[%s247 + $0x8] sm:$0xff]
      %v663 = vld [vmem:[%s247 + $0x10] sm:$0xff]
      %v664 = vld [vmem:[%s247 + $0x18] sm:$0xff]
      %v665 = vld [vmem:[%s247 + $0x20] sm:$0xff]
      %v666 = vld [vmem:[%s247 + $0x28] sm:$0xff]
      %v667 = vld [vmem:[%s247 + $0x30] sm:$0xff]
      %v668 = vld [vmem:[%s247 + $0x38] sm:$0xff]
      %v669 = vld [vmem:[%s247 + $0x40] sm:$0xff]
      %v670 = vld [vmem:[%s247 + $0x48] sm:$0xff]
      %v671 = vld [vmem:[%s247 + $0x50] sm:$0xff]
      %v672 = vld [vmem:[%s247 + $0x58] sm:$0xff]
      %v673 = vld [vmem:[%s247 + $0x60] sm:$0xff]
      %v674 = vld [vmem:[%s247 + $0x68] sm:$0xff]
      %v675 = vld [vmem:[%s247 + $0x70] sm:$0xff]
      %v676 = vld [vmem:[%s247 + $0x78] sm:$0xff]
      %v677 = vsel %vm279, %v661, 1.0
      %v678 = vsel %vm279, %v662, 1.0
      %v679 = vsel %vm279, %v663, 1.0
      %v680 = vsel %vm279, %v664, 1.0
      %v681 = vsel %vm279, %v665, 1.0
      %v682 = vsel %vm279, %v666, 1.0
      %v683 = vsel %vm279, %v667, 1.0
      %v684 = vsel %vm279, %v668, 1.0
      %v685 = vsel %vm279, %v669, 1.0
      %v686 = vsel %vm279, %v670, 1.0
      %v687 = vsel %vm279, %v671, 1.0
      %v688 = vsel %vm279, %v672, 1.0
      %v689 = vsel %vm279, %v673, 1.0
      %v690 = vsel %vm279, %v674, 1.0
      %v691 = vsel %vm279, %v675, 1.0
      %v692 = vsel %vm279, %v676, 1.0
      %693 = vxpose.xlu0.b32.start [1/16] %v645, 128
      %694 = vxpose.xlu0.b32.cont [2/16] %v646, 128
      %695 = vxpose.xlu0.b32.cont [3/16] %v647, 128
      %696 = vxpose.xlu0.b32.cont [4/16] %v648, 128
      %697 = vxpose.xlu0.b32.cont [5/16] %v649, 128
      %698 = vxpose.xlu0.b32.cont [6/16] %v650, 128
      %699 = vxpose.xlu0.b32.cont [7/16] %v651, 128
      %700 = vxpose.xlu0.b32.cont [8/16] %v652, 128
      %701 = vxpose.xlu0.b32.cont [9/16] 0.0, 128
      %702 = vxpose.xlu0.b32.cont [10/16] 0.0, 128
      %703 = vxpose.xlu0.b32.cont [11/16] 0.0, 128
      %704 = vxpose.xlu0.b32.cont [12/16] 0.0, 128
      %705 = vxpose.xlu0.b32.cont [13/16] 0.0, 128
      %706 = vxpose.xlu0.b32.cont [14/16] 0.0, 128
      %707 = vxpose.xlu0.b32.cont [15/16] 0.0, 128
      %708 = vxpose.xlu0.b32.end [16/16] 0.0, 128
      %v709 = vpop.trf.xlu0
      %v710 = vpop.trf.xlu0
      %v711 = vpop.trf.xlu0
      %v712 = vpop.trf.xlu0
      %v713 = vpop.trf.xlu0
      %v714 = vpop.trf.xlu0
      %v715 = vpop.trf.xlu0
      %v716 = vpop.trf.xlu0
      %v717 = vpop.trf.xlu0
      %v718 = vpop.trf.xlu0
      %v719 = vpop.trf.xlu0
      %v720 = vpop.trf.xlu0
      %v721 = vpop.trf.xlu0
      %v722 = vpop.trf.xlu0
      %v723 = vpop.trf.xlu0
      %v724 = vpop.trf.xlu0
      %vm725 = vcmask 523264
      %v727 = vsel %vm725, %v709, 0
      %v730 = vsel %vm725, %v710, 0
      %v733 = vsel %vm725, %v711, 0
      %v736 = vsel %vm725, %v712, 0
      %v739 = vsel %vm725, %v713, 0
      %v742 = vsel %vm725, %v714, 0
      %v745 = vsel %vm725, %v715, 0
      %v748 = vsel %vm725, %v716, 0
      %v751 = vsel %vm725, %v717, 0
      %v754 = vsel %vm725, %v718, 0
      %v757 = vsel %vm725, %v719, 0
      %v760 = vsel %vm725, %v720, 0
      %v763 = vsel %vm725, %v721, 0
      %v766 = vsel %vm725, %v722, 0
      %v769 = vsel %vm725, %v723, 0
      %v772 = vsel %vm725, %v724, 0
      %774 = vmatpush.msra.mxu0 0.0
      %775 = vmatpush.msra.mxu0 0.0
      %776 = vmatpush.msra.mxu0 0.0
      %777 = vmatpush.msra.mxu0 0.0
      %778 = vmatpush.msra.mxu0 0.0
      %779 = vmatpush.msra.mxu0 0.0
      %780 = vmatpush.msra.mxu0 0.0
      %781 = vmatpush.msra.mxu0 0.0
      %782 = vmatpush.msra.mxu0 %v684
      %783 = vmatpush.msra.mxu0 %v683
      %784 = vmatpush.msra.mxu0 %v682
      %785 = vmatpush.msra.mxu0 %v681
      %786 = vmatpush.msra.mxu0 %v680
      %787 = vmatpush.msra.mxu0 %v679
      %788 = vmatpush.msra.mxu0 %v678
      %789 = vmatpush.msra.mxu0 %v677
      %790 = vmatmul.f32.gmra.mxu0 %v727
      %v791 = vpop.f32.mrf.mxu0
      %v792 = vadd.f32 0.0, %v791
      %793 = vmatmul.f32.gmra.mxu0 %v730
      %v794 = vpop.f32.mrf.mxu0
      %v795 = vadd.f32 0.0, %v794
      %796 = vmatmul.f32.gmra.mxu0 %v733
      %v797 = vpop.f32.mrf.mxu0
      %v798 = vadd.f32 0.0, %v797
      %799 = vmatmul.f32.gmra.mxu0 %v736
      %v800 = vpop.f32.mrf.mxu0
      %v801 = vadd.f32 0.0, %v800
      %802 = vmatmul.f32.gmra.mxu0 %v739
      %v803 = vpop.f32.mrf.mxu0
      %v804 = vadd.f32 0.0, %v803
      %805 = vmatmul.f32.gmra.mxu0 %v742
      %v806 = vpop.f32.mrf.mxu0
      %v807 = vadd.f32 0.0, %v806
      %808 = vmatmul.f32.gmra.mxu0 %v745
      %v809 = vpop.f32.mrf.mxu0
      %v810 = vadd.f32 0.0, %v809
      %811 = vmatmul.f32.gmra.mxu0 %v748
      %v812 = vpop.f32.mrf.mxu0
      %v813 = vadd.f32 0.0, %v812
      %814 = vmatmul.f32.gmra.mxu0 %v751
      %v815 = vpop.f32.mrf.mxu0
      %v816 = vadd.f32 0.0, %v815
      %817 = vmatmul.f32.gmra.mxu0 %v754
      %v818 = vpop.f32.mrf.mxu0
      %v819 = vadd.f32 0.0, %v818
      %820 = vmatmul.f32.gmra.mxu0 %v757
      %v821 = vpop.f32.mrf.mxu0
      %v822 = vadd.f32 0.0, %v821
      %823 = vmatmul.f32.gmra.mxu0 %v760
      %v824 = vpop.f32.mrf.mxu0
      %v825 = vadd.f32 0.0, %v824
      %826 = vmatmul.f32.gmra.mxu0 %v763
      %v827 = vpop.f32.mrf.mxu0
      %v828 = vadd.f32 0.0, %v827
      %829 = vmatmul.f32.gmra.mxu0 %v766
      %v830 = vpop.f32.mrf.mxu0
      %v831 = vadd.f32 0.0, %v830
      %832 = vmatmul.f32.gmra.mxu0 %v769
      %v833 = vpop.f32.mrf.mxu0
      %v834 = vadd.f32 0.0, %v833
      %835 = vmatmul.f32.gmra.mxu0 %v772
      %v836 = vpop.f32.mrf.mxu0
      %v837 = vadd.f32 0.0, %v836
      %838 = vdwg.mxu0
      %839 = vxpose.xlu0.b32.start [1/16] %v653, 128
      %840 = vxpose.xlu0.b32.cont [2/16] %v654, 128
      %841 = vxpose.xlu0.b32.cont [3/16] %v655, 128
      %842 = vxpose.xlu0.b32.cont [4/16] %v656, 128
      %843 = vxpose.xlu0.b32.cont [5/16] %v657, 128
      %844 = vxpose.xlu0.b32.cont [6/16] %v658, 128
      %845 = vxpose.xlu0.b32.cont [7/16] %v659, 128
      %846 = vxpose.xlu0.b32.cont [8/16] %v660, 128
      %847 = vxpose.xlu0.b32.cont [9/16] 0.0, 128
      %848 = vxpose.xlu0.b32.cont [10/16] 0.0, 128
      %849 = vxpose.xlu0.b32.cont [11/16] 0.0, 128
      %850 = vxpose.xlu0.b32.cont [12/16] 0.0, 128
      %851 = vxpose.xlu0.b32.cont [13/16] 0.0, 128
      %852 = vxpose.xlu0.b32.cont [14/16] 0.0, 128
      %853 = vxpose.xlu0.b32.cont [15/16] 0.0, 128
      %854 = vxpose.xlu0.b32.end [16/16] 0.0, 128
      %v855 = vpop.trf.xlu0
      %v856 = vpop.trf.xlu0
      %v857 = vpop.trf.xlu0
      %v858 = vpop.trf.xlu0
      %v859 = vpop.trf.xlu0
      %v860 = vpop.trf.xlu0
      %v861 = vpop.trf.xlu0
      %v862 = vpop.trf.xlu0
      %v863 = vpop.trf.xlu0
      %v864 = vpop.trf.xlu0
      %v865 = vpop.trf.xlu0
      %v866 = vpop.trf.xlu0
      %v867 = vpop.trf.xlu0
      %v868 = vpop.trf.xlu0
      %v869 = vpop.trf.xlu0
      %v870 = vpop.trf.xlu0
      %v872 = vsel %vm725, %v855, 0
      %v875 = vsel %vm725, %v856, 0
      %v878 = vsel %vm725, %v857, 0
      %v881 = vsel %vm725, %v858, 0
      %v884 = vsel %vm725, %v859, 0
      %v887 = vsel %vm725, %v860, 0
      %v890 = vsel %vm725, %v861, 0
      %v893 = vsel %vm725, %v862, 0
      %v896 = vsel %vm725, %v863, 0
      %v899 = vsel %vm725, %v864, 0
      %v902 = vsel %vm725, %v865, 0
      %v905 = vsel %vm725, %v866, 0
      %v908 = vsel %vm725, %v867, 0
      %v911 = vsel %vm725, %v868, 0
      %v914 = vsel %vm725, %v869, 0
      %v917 = vsel %vm725, %v870, 0
      %919 = vmatpush.msra.mxu0 0.0
      %920 = vmatpush.msra.mxu0 0.0
      %921 = vmatpush.msra.mxu0 0.0
      %922 = vmatpush.msra.mxu0 0.0
      %923 = vmatpush.msra.mxu0 0.0
      %924 = vmatpush.msra.mxu0 0.0
      %925 = vmatpush.msra.mxu0 0.0
      %926 = vmatpush.msra.mxu0 0.0
      %927 = vmatpush.msra.mxu0 %v692
      %928 = vmatpush.msra.mxu0 %v691
      %929 = vmatpush.msra.mxu0 %v690
      %930 = vmatpush.msra.mxu0 %v689
      %931 = vmatpush.msra.mxu0 %v688
      %932 = vmatpush.msra.mxu0 %v687
      %933 = vmatpush.msra.mxu0 %v686
      %934 = vmatpush.msra.mxu0 %v685
      %935 = vmatmul.f32.gmra.mxu0 %v872
      %v936 = vpop.f32.mrf.mxu0
      %v937 = vadd.f32 0.0, %v936
      %938 = vmatmul.f32.gmra.mxu0 %v875
      %v939 = vpop.f32.mrf.mxu0
      %v940 = vadd.f32 0.0, %v939
      %941 = vmatmul.f32.gmra.mxu0 %v878
      %v942 = vpop.f32.mrf.mxu0
      %v943 = vadd.f32 0.0, %v942
      %944 = vmatmul.f32.gmra.mxu0 %v881
      %v945 = vpop.f32.mrf.mxu0
      %v946 = vadd.f32 0.0, %v945
      %947 = vmatmul.f32.gmra.mxu0 %v884
      %v948 = vpop.f32.mrf.mxu0
      %v949 = vadd.f32 0.0, %v948
      %950 = vmatmul.f32.gmra.mxu0 %v887
      %v951 = vpop.f32.mrf.mxu0
      %v952 = vadd.f32 0.0, %v951
      %953 = vmatmul.f32.gmra.mxu0 %v890
      %v954 = vpop.f32.mrf.mxu0
      %v955 = vadd.f32 0.0, %v954
      %956 = vmatmul.f32.gmra.mxu0 %v893
      %v957 = vpop.f32.mrf.mxu0
      %v958 = vadd.f32 0.0, %v957
      %959 = vmatmul.f32.gmra.mxu0 %v896
      %v960 = vpop.f32.mrf.mxu0
      %v961 = vadd.f32 0.0, %v960
      %962 = vmatmul.f32.gmra.mxu0 %v899
      %v963 = vpop.f32.mrf.mxu0
      %v964 = vadd.f32 0.0, %v963
      %965 = vmatmul.f32.gmra.mxu0 %v902
      %v966 = vpop.f32.mrf.mxu0
      %v967 = vadd.f32 0.0, %v966
      %968 = vmatmul.f32.gmra.mxu0 %v905
      %v969 = vpop.f32.mrf.mxu0
      %v970 = vadd.f32 0.0, %v969
      %971 = vmatmul.f32.gmra.mxu0 %v908
      %v972 = vpop.f32.mrf.mxu0
      %v973 = vadd.f32 0.0, %v972
      %974 = vmatmul.f32.gmra.mxu0 %v911
      %v975 = vpop.f32.mrf.mxu0
      %v976 = vadd.f32 0.0, %v975
      %977 = vmatmul.f32.gmra.mxu0 %v914
      %v978 = vpop.f32.mrf.mxu0
      %v979 = vadd.f32 0.0, %v978
      %980 = vmatmul.f32.gmra.mxu0 %v917
      %v981 = vpop.f32.mrf.mxu0
      %v982 = vadd.f32 0.0, %v981
      %983 = vdwg.mxu0
      %v984 = vld [vmem:[%s233] sm:$0xff]
      %v985 = vld [vmem:[%s233 + $0x8] sm:$0xff]
      %v986 = vld [vmem:[%s233 + $0x10] sm:$0xff]
      %v987 = vld [vmem:[%s233 + $0x18] sm:$0xff]
      %v988 = vld [vmem:[%s233 + $0x20] sm:$0xff]
      %v989 = vld [vmem:[%s233 + $0x28] sm:$0xff]
      %v990 = vld [vmem:[%s233 + $0x30] sm:$0xff]
      %v991 = vld [vmem:[%s233 + $0x38] sm:$0xff]
      %v992 = vld [vmem:[%s233 + $0x40] sm:$0xff]
      %v993 = vld [vmem:[%s233 + $0x48] sm:$0xff]
      %v994 = vld [vmem:[%s233 + $0x50] sm:$0xff]
      %v995 = vld [vmem:[%s233 + $0x58] sm:$0xff]
      %v996 = vld [vmem:[%s233 + $0x60] sm:$0xff]
      %v997 = vld [vmem:[%s233 + $0x68] sm:$0xff]
      %v998 = vld [vmem:[%s233 + $0x70] sm:$0xff]
      %v999 = vld [vmem:[%s233 + $0x78] sm:$0xff]
      %v1001 = vsel %vm279, %v984, 0
      %v1004 = vsel %vm279, %v985, 0
      %v1007 = vsel %vm279, %v986, 0
      %v1010 = vsel %vm279, %v987, 0
      %v1013 = vsel %vm279, %v988, 0
      %v1016 = vsel %vm279, %v989, 0
      %v1019 = vsel %vm279, %v990, 0
      %v1022 = vsel %vm279, %v991, 0
      %v1025 = vsel %vm279, %v992, 0
      %v1028 = vsel %vm279, %v993, 0
      %v1031 = vsel %vm279, %v994, 0
      %v1034 = vsel %vm279, %v995, 0
      %v1037 = vsel %vm279, %v996, 0
      %v1040 = vsel %vm279, %v997, 0
      %v1043 = vsel %vm279, %v998, 0
      %v1046 = vsel %vm279, %v999, 0
      %1048 = vmatpush.msra.mxu0 0.0
      %1049 = vmatpush.msra.mxu0 0.0
      %1050 = vmatpush.msra.mxu0 0.0
      %1051 = vmatpush.msra.mxu0 0.0
      %1052 = vmatpush.msra.mxu0 0.0
      %1053 = vmatpush.msra.mxu0 0.0
      %1054 = vmatpush.msra.mxu0 0.0
      %1055 = vmatpush.msra.mxu0 0.0
      %1056 = vmatpush.msra.mxu0 0.0
      %1057 = vmatpush.msra.mxu0 0.0
      %1058 = vmatpush.msra.mxu0 0.0
      %1059 = vmatpush.msra.mxu0 0.0
      %1060 = vmatpush.msra.mxu0 %v259
      %1061 = vmatpush.msra.mxu0 %v258
      %1062 = vmatpush.msra.mxu0 %v257
      %1063 = vmatpush.msra.mxu0 %v256
      %1064 = vmatmul.f32.gmra.mxu0 %v1001
      %v1065 = vpop.f32.mrf.mxu0
      %v1066 = vadd.f32 0.0, %v1065
      %1067 = vmatmul.f32.gmra.mxu0 %v1004
      %v1068 = vpop.f32.mrf.mxu0
      %v1069 = vadd.f32 0.0, %v1068
      %1070 = vmatmul.f32.gmra.mxu0 %v1007
      %v1071 = vpop.f32.mrf.mxu0
      %v1072 = vadd.f32 0.0, %v1071
      %1073 = vmatmul.f32.gmra.mxu0 %v1010
      %v1074 = vpop.f32.mrf.mxu0
      %v1075 = vadd.f32 0.0, %v1074
      %1076 = vmatmul.f32.gmra.mxu0 %v1013
      %v1077 = vpop.f32.mrf.mxu0
      %v1078 = vadd.f32 0.0, %v1077
      %1079 = vmatmul.f32.gmra.mxu0 %v1016
      %v1080 = vpop.f32.mrf.mxu0
      %v1081 = vadd.f32 0.0, %v1080
      %1082 = vmatmul.f32.gmra.mxu0 %v1019
      %v1083 = vpop.f32.mrf.mxu0
      %v1084 = vadd.f32 0.0, %v1083
      %1085 = vmatmul.f32.gmra.mxu0 %v1022
      %v1086 = vpop.f32.mrf.mxu0
      %v1087 = vadd.f32 0.0, %v1086
      %1088 = vmatmul.f32.gmra.mxu0 %v1025
      %v1089 = vpop.f32.mrf.mxu0
      %v1090 = vadd.f32 0.0, %v1089
      %1091 = vmatmul.f32.gmra.mxu0 %v1028
      %v1092 = vpop.f32.mrf.mxu0
      %v1093 = vadd.f32 0.0, %v1092
      %1094 = vmatmul.f32.gmra.mxu0 %v1031
      %v1095 = vpop.f32.mrf.mxu0
      %v1096 = vadd.f32 0.0, %v1095
      %1097 = vmatmul.f32.gmra.mxu0 %v1034
      %v1098 = vpop.f32.mrf.mxu0
      %v1099 = vadd.f32 0.0, %v1098
      %1100 = vmatmul.f32.gmra.mxu0 %v1037
      %v1101 = vpop.f32.mrf.mxu0
      %v1102 = vadd.f32 0.0, %v1101
      %1103 = vmatmul.f32.gmra.mxu0 %v1040
      %v1104 = vpop.f32.mrf.mxu0
      %v1105 = vadd.f32 0.0, %v1104
      %1106 = vmatmul.f32.gmra.mxu0 %v1043
      %v1107 = vpop.f32.mrf.mxu0
      %v1108 = vadd.f32 0.0, %v1107
      %1109 = vmatmul.f32.gmra.mxu0 %v1046
      %v1110 = vpop.f32.mrf.mxu0
      %v1111 = vadd.f32 0.0, %v1110
      %1112 = vdwg.mxu0
      %v1113 = vmul.f32 %v984, %v984
      %v1114 = vmul.f32 %v985, %v985
      %v1115 = vmul.f32 %v986, %v986
      %v1116 = vmul.f32 %v987, %v987
      %v1117 = vmul.f32 %v988, %v988
      %v1118 = vmul.f32 %v989, %v989
      %v1119 = vmul.f32 %v990, %v990
      %v1120 = vmul.f32 %v991, %v991
      %v1121 = vmul.f32 %v992, %v992
      %v1122 = vmul.f32 %v993, %v993
      %v1123 = vmul.f32 %v994, %v994
      %v1124 = vmul.f32 %v995, %v995
      %v1125 = vmul.f32 %v996, %v996
      %v1126 = vmul.f32 %v997, %v997
      %v1127 = vmul.f32 %v998, %v998
      %v1128 = vmul.f32 %v999, %v999
      %v1129 = vsel %vm279, %v1113, 0.0
      %1130 = vadd.xlane.f32.xlu0 %v1129
      %v1131 = vpop.xlane.xlu0 %1130
      %v1132 = vsel %vm279, %v1114, 0.0
      %1133 = vadd.xlane.f32.xlu0 %v1132
      %v1134 = vpop.xlane.xlu0 %1133
      %v1135 = vsel %vm279, %v1115, 0.0
      %1136 = vadd.xlane.f32.xlu0 %v1135
      %v1137 = vpop.xlane.xlu0 %1136
      %v1138 = vsel %vm279, %v1116, 0.0
      %1139 = vadd.xlane.f32.xlu0 %v1138
      %v1140 = vpop.xlane.xlu0 %1139
      %v1141 = vsel %vm279, %v1117, 0.0
      %1142 = vadd.xlane.f32.xlu0 %v1141
      %v1143 = vpop.xlane.xlu0 %1142
      %v1144 = vsel %vm279, %v1118, 0.0
      %1145 = vadd.xlane.f32.xlu0 %v1144
      %v1146 = vpop.xlane.xlu0 %1145
      %v1147 = vsel %vm279, %v1119, 0.0
      %1148 = vadd.xlane.f32.xlu0 %v1147
      %v1149 = vpop.xlane.xlu0 %1148
      %v1150 = vsel %vm279, %v1120, 0.0
      %1151 = vadd.xlane.f32.xlu0 %v1150
      %v1152 = vpop.xlane.xlu0 %1151
      %v1153 = vsel %vm279, %v1121, 0.0
      %1154 = vadd.xlane.f32.xlu0 %v1153
      %v1155 = vpop.xlane.xlu0 %1154
      %v1156 = vsel %vm279, %v1122, 0.0
      %1157 = vadd.xlane.f32.xlu0 %v1156
      %v1158 = vpop.xlane.xlu0 %1157
      %v1159 = vsel %vm279, %v1123, 0.0
      %1160 = vadd.xlane.f32.xlu0 %v1159
      %v1161 = vpop.xlane.xlu0 %1160
      %v1162 = vsel %vm279, %v1124, 0.0
      %1163 = vadd.xlane.f32.xlu0 %v1162
      %v1164 = vpop.xlane.xlu0 %1163
      %v1165 = vsel %vm279, %v1125, 0.0
      %1166 = vadd.xlane.f32.xlu0 %v1165
      %v1167 = vpop.xlane.xlu0 %1166
      %v1168 = vsel %vm279, %v1126, 0.0
      %1169 = vadd.xlane.f32.xlu0 %v1168
      %v1170 = vpop.xlane.xlu0 %1169
      %v1171 = vsel %vm279, %v1127, 0.0
      %1172 = vadd.xlane.f32.xlu0 %v1171
      %v1173 = vpop.xlane.xlu0 %1172
      %v1174 = vsel %vm279, %v1128, 0.0
      %1175 = vadd.xlane.f32.xlu0 %v1174
      %v1176 = vpop.xlane.xlu0 %1175
      %v1177 = vmul.f32 %v1131, 0.088388346
      %v1178 = vmul.f32 %v1134, 0.088388346
      %v1179 = vmul.f32 %v1137, 0.088388346
      %v1180 = vmul.f32 %v1140, 0.088388346
      %v1181 = vmul.f32 %v1143, 0.088388346
      %v1182 = vmul.f32 %v1146, 0.088388346
      %v1183 = vmul.f32 %v1149, 0.088388346
      %v1184 = vmul.f32 %v1152, 0.088388346
      %v1185 = vmul.f32 %v1155, 0.088388346
      %v1186 = vmul.f32 %v1158, 0.088388346
      %v1187 = vmul.f32 %v1161, 0.088388346
      %v1188 = vmul.f32 %v1164, 0.088388346
      %v1189 = vmul.f32 %v1167, 0.088388346
      %v1190 = vmul.f32 %v1170, 0.088388346
      %v1191 = vmul.f32 %v1173, 0.088388346
      %v1192 = vmul.f32 %v1176, 0.088388346
      %v1193 = vsel %vm474, %v1066, -inf
      %v1194 = vsel %vm474, %v1069, -inf
      %v1195 = vsel %vm474, %v1072, -inf
      %v1196 = vsel %vm474, %v1075, -inf
      %v1197 = vsel %vm474, %v1078, -inf
      %v1198 = vsel %vm474, %v1081, -inf
      %v1199 = vsel %vm474, %v1084, -inf
      %v1200 = vsel %vm474, %v1087, -inf
      %v1201 = vsel %vm474, %v1090, -inf
      %v1202 = vsel %vm474, %v1093, -inf
      %v1203 = vsel %vm474, %v1096, -inf
      %v1204 = vsel %vm474, %v1099, -inf
      %v1205 = vsel %vm474, %v1102, -inf
      %v1206 = vsel %vm474, %v1105, -inf
      %v1207 = vsel %vm474, %v1108, -inf
      %v1208 = vsel %vm474, %v1111, -inf
      %1209 = vmax.xlane.f32.xlu0 %v1193
      %v1210 = vpop.xlane.xlu0 %1209
      %1211 = vmax.xlane.f32.xlu0 %v1194
      %v1212 = vpop.xlane.xlu0 %1211
      %1213 = vmax.xlane.f32.xlu0 %v1195
      %v1214 = vpop.xlane.xlu0 %1213
      %1215 = vmax.xlane.f32.xlu0 %v1196
      %v1216 = vpop.xlane.xlu0 %1215
      %1217 = vmax.xlane.f32.xlu0 %v1197
      %v1218 = vpop.xlane.xlu0 %1217
      %1219 = vmax.xlane.f32.xlu0 %v1198
      %v1220 = vpop.xlane.xlu0 %1219
      %1221 = vmax.xlane.f32.xlu0 %v1199
      %v1222 = vpop.xlane.xlu0 %1221
      %1223 = vmax.xlane.f32.xlu0 %v1200
      %v1224 = vpop.xlane.xlu0 %1223
      %1225 = vmax.xlane.f32.xlu0 %v1201
      %v1226 = vpop.xlane.xlu0 %1225
      %1227 = vmax.xlane.f32.xlu0 %v1202
      %v1228 = vpop.xlane.xlu0 %1227
      %1229 = vmax.xlane.f32.xlu0 %v1203
      %v1230 = vpop.xlane.xlu0 %1229
      %1231 = vmax.xlane.f32.xlu0 %v1204
      %v1232 = vpop.xlane.xlu0 %1231
      %1233 = vmax.xlane.f32.xlu0 %v1205
      %v1234 = vpop.xlane.xlu0 %1233
      %1235 = vmax.xlane.f32.xlu0 %v1206
      %v1236 = vpop.xlane.xlu0 %1235
      %1237 = vmax.xlane.f32.xlu0 %v1207
      %v1238 = vpop.xlane.xlu0 %1237
      %1239 = vmax.xlane.f32.xlu0 %v1208
      %v1240 = vpop.xlane.xlu0 %1239
      %v1241 = vsub.f32 %v1066, %v1177
      %v1242 = vsub.f32 %v1069, %v1178
      %v1243 = vsub.f32 %v1072, %v1179
      %v1244 = vsub.f32 %v1075, %v1180
      %v1245 = vsub.f32 %v1078, %v1181
      %v1246 = vsub.f32 %v1081, %v1182
      %v1247 = vsub.f32 %v1084, %v1183
      %v1248 = vsub.f32 %v1087, %v1184
      %v1249 = vsub.f32 %v1090, %v1185
      %v1250 = vsub.f32 %v1093, %v1186
      %v1251 = vsub.f32 %v1096, %v1187
      %v1252 = vsub.f32 %v1099, %v1188
      %v1253 = vsub.f32 %v1102, %v1189
      %v1254 = vsub.f32 %v1105, %v1190
      %v1255 = vsub.f32 %v1108, %v1191
      %v1256 = vsub.f32 %v1111, %v1192
      %v1257 = vsub.f32 %v1241, %v1210
      %v1258 = vsub.f32 %v1242, %v1212
      %v1259 = vsub.f32 %v1243, %v1214
      %v1260 = vsub.f32 %v1244, %v1216
      %v1261 = vsub.f32 %v1245, %v1218
      %v1262 = vsub.f32 %v1246, %v1220
      %v1263 = vsub.f32 %v1247, %v1222
      %v1264 = vsub.f32 %v1248, %v1224
      %v1265 = vsub.f32 %v1249, %v1226
      %v1266 = vsub.f32 %v1250, %v1228
      %v1267 = vsub.f32 %v1251, %v1230
      %v1268 = vsub.f32 %v1252, %v1232
      %v1269 = vsub.f32 %v1253, %v1234
      %v1270 = vsub.f32 %v1254, %v1236
      %v1271 = vsub.f32 %v1255, %v1238
      %v1272 = vsub.f32 %v1256, %v1240
      %v1273 = vadd.f32 %v1257, -2.3502402
      %v1274 = vadd.f32 %v1258, -2.3502402
      %v1275 = vadd.f32 %v1259, -2.3502402
      %v1276 = vadd.f32 %v1260, -2.3502402
      %v1277 = vadd.f32 %v1261, -2.3502402
      %v1278 = vadd.f32 %v1262, -2.3502402
      %v1279 = vadd.f32 %v1263, -2.3502402
      %v1280 = vadd.f32 %v1264, -2.3502402
      %v1281 = vadd.f32 %v1265, -2.3502402
      %v1282 = vadd.f32 %v1266, -2.3502402
      %v1283 = vadd.f32 %v1267, -2.3502402
      %v1284 = vadd.f32 %v1268, -2.3502402
      %v1285 = vadd.f32 %v1269, -2.3502402
      %v1286 = vadd.f32 %v1270, -2.3502402
      %v1287 = vadd.f32 %v1271, -2.3502402
      %v1288 = vadd.f32 %v1272, -2.3502402
      %v1289 = vmul.f32 %v1273, 1.442695
      %v1290 = vpow.pop %v1289
      %v1291 = vmul.f32 %v1274, 1.442695
      %v1292 = vpow.pop %v1291
      %v1293 = vmul.f32 %v1275, 1.442695
      %v1294 = vpow.pop %v1293
      %v1295 = vmul.f32 %v1276, 1.442695
      %v1296 = vpow.pop %v1295
      %v1297 = vmul.f32 %v1277, 1.442695
      %v1298 = vpow.pop %v1297
      %v1299 = vmul.f32 %v1278, 1.442695
      %v1300 = vpow.pop %v1299
      %v1301 = vmul.f32 %v1279, 1.442695
      %v1302 = vpow.pop %v1301
      %v1303 = vmul.f32 %v1280, 1.442695
      %v1304 = vpow.pop %v1303
      %v1305 = vmul.f32 %v1281, 1.442695
      %v1306 = vpow.pop %v1305
      %v1307 = vmul.f32 %v1282, 1.442695
      %v1308 = vpow.pop %v1307
      %v1309 = vmul.f32 %v1283, 1.442695
      %v1310 = vpow.pop %v1309
      %v1311 = vmul.f32 %v1284, 1.442695
      %v1312 = vpow.pop %v1311
      %v1313 = vmul.f32 %v1285, 1.442695
      %v1314 = vpow.pop %v1313
      %v1315 = vmul.f32 %v1286, 1.442695
      %v1316 = vpow.pop %v1315
      %v1317 = vmul.f32 %v1287, 1.442695
      %v1318 = vpow.pop %v1317
      %v1319 = vmul.f32 %v1288, 1.442695
      %v1320 = vpow.pop %v1319
      %v1321 = vadd.f32 %v1290, 9.534626e-06
      %v1322 = vadd.f32 %v1292, 9.534626e-06
      %v1323 = vadd.f32 %v1294, 9.534626e-06
      %v1324 = vadd.f32 %v1296, 9.534626e-06
      %v1325 = vadd.f32 %v1298, 9.534626e-06
      %v1326 = vadd.f32 %v1300, 9.534626e-06
      %v1327 = vadd.f32 %v1302, 9.534626e-06
      %v1328 = vadd.f32 %v1304, 9.534626e-06
      %v1329 = vadd.f32 %v1306, 9.534626e-06
      %v1330 = vadd.f32 %v1308, 9.534626e-06
      %v1331 = vadd.f32 %v1310, 9.534626e-06
      %v1332 = vadd.f32 %v1312, 9.534626e-06
      %v1333 = vadd.f32 %v1314, 9.534626e-06
      %v1334 = vadd.f32 %v1316, 9.534626e-06
      %v1335 = vadd.f32 %v1318, 9.534626e-06
      %v1336 = vadd.f32 %v1320, 9.534626e-06
      %1337 = vmatpush.msra.mxu0 %v837
      %1338 = vmatpush.msra.mxu0 %v834
      %1339 = vmatpush.msra.mxu0 %v831
      %1340 = vmatpush.msra.mxu0 %v828
      %1341 = vmatpush.msra.mxu0 %v825
      %1342 = vmatpush.msra.mxu0 %v822
      %1343 = vmatpush.msra.mxu0 %v819
      %1344 = vmatpush.msra.mxu0 %v816
      %1345 = vmatpush.msra.mxu0 %v813
      %1346 = vmatpush.msra.mxu0 %v810
      %1347 = vmatpush.msra.mxu0 %v807
      %1348 = vmatpush.msra.mxu0 %v804
      %1349 = vmatpush.msra.mxu0 %v801
      %1350 = vmatpush.msra.mxu0 %v798
      %1351 = vmatpush.msra.mxu0 %v795
      %1352 = vmatpush.msra.mxu0 %v792
      %1353 = vmatmul.f32.gmra.mxu0 %v1321
      %v1354 = vpop.f32.mrf.mxu0
      %v1355 = vadd.f32 0.0, %v1354
      %1356 = vmatmul.f32.gmra.mxu0 %v1322
      %v1357 = vpop.f32.mrf.mxu0
      %v1358 = vadd.f32 0.0, %v1357
      %1359 = vmatmul.f32.gmra.mxu0 %v1323
      %v1360 = vpop.f32.mrf.mxu0
      %v1361 = vadd.f32 0.0, %v1360
      %1362 = vmatmul.f32.gmra.mxu0 %v1324
      %v1363 = vpop.f32.mrf.mxu0
      %v1364 = vadd.f32 0.0, %v1363
      %1365 = vmatmul.f32.gmra.mxu0 %v1325
      %v1366 = vpop.f32.mrf.mxu0
      %v1367 = vadd.f32 0.0, %v1366
      %1368 = vmatmul.f32.gmra.mxu0 %v1326
      %v1369 = vpop.f32.mrf.mxu0
      %v1370 = vadd.f32 0.0, %v1369
      %1371 = vmatmul.f32.gmra.mxu0 %v1327
      %v1372 = vpop.f32.mrf.mxu0
      %v1373 = vadd.f32 0.0, %v1372
      %1374 = vmatmul.f32.gmra.mxu0 %v1328
      %v1375 = vpop.f32.mrf.mxu0
      %v1376 = vadd.f32 0.0, %v1375
      %1377 = vdwg.mxu0
      %1378 = vmatpush.msra.mxu0 %v982
      %1379 = vmatpush.msra.mxu0 %v979
      %1380 = vmatpush.msra.mxu0 %v976
      %1381 = vmatpush.msra.mxu0 %v973
      %1382 = vmatpush.msra.mxu0 %v970
      %1383 = vmatpush.msra.mxu0 %v967
      %1384 = vmatpush.msra.mxu0 %v964
      %1385 = vmatpush.msra.mxu0 %v961
      %1386 = vmatpush.msra.mxu0 %v958
      %1387 = vmatpush.msra.mxu0 %v955
      %1388 = vmatpush.msra.mxu0 %v952
      %1389 = vmatpush.msra.mxu0 %v949
      %1390 = vmatpush.msra.mxu0 %v946
      %1391 = vmatpush.msra.mxu0 %v943
      %1392 = vmatpush.msra.mxu0 %v940
      %1393 = vmatpush.msra.mxu0 %v937
      %1394 = vmatmul.f32.gmra.mxu0 %v1329
      %v1395 = vpop.f32.mrf.mxu0
      %v1396 = vadd.f32 0.0, %v1395
      %1397 = vmatmul.f32.gmra.mxu0 %v1330
      %v1398 = vpop.f32.mrf.mxu0
      %v1399 = vadd.f32 0.0, %v1398
      %1400 = vmatmul.f32.gmra.mxu0 %v1331
      %v1401 = vpop.f32.mrf.mxu0
      %v1402 = vadd.f32 0.0, %v1401
      %1403 = vmatmul.f32.gmra.mxu0 %v1332
      %v1404 = vpop.f32.mrf.mxu0
      %v1405 = vadd.f32 0.0, %v1404
      %1406 = vmatmul.f32.gmra.mxu0 %v1333
      %v1407 = vpop.f32.mrf.mxu0
      %v1408 = vadd.f32 0.0, %v1407
      %1409 = vmatmul.f32.gmra.mxu0 %v1334
      %v1410 = vpop.f32.mrf.mxu0
      %v1411 = vadd.f32 0.0, %v1410
      %1412 = vmatmul.f32.gmra.mxu0 %v1335
      %v1413 = vpop.f32.mrf.mxu0
      %v1414 = vadd.f32 0.0, %v1413
      %1415 = vmatmul.f32.gmra.mxu0 %v1336
      %v1416 = vpop.f32.mrf.mxu0
      %v1417 = vadd.f32 0.0, %v1416
      %1418 = vdwg.mxu0
      %v1419 = vrcp.pop %v1355
      %v1420 = vrcp.pop %v1358
      %v1421 = vrcp.pop %v1361
      %v1422 = vrcp.pop %v1364
      %v1423 = vrcp.pop %v1367
      %v1424 = vrcp.pop %v1370
      %v1425 = vrcp.pop %v1373
      %v1426 = vrcp.pop %v1376
      %v1427 = vrcp.pop %v1396
      %v1428 = vrcp.pop %v1399
      %v1429 = vrcp.pop %v1402
      %v1430 = vrcp.pop %v1405
      %v1431 = vrcp.pop %v1408
      %v1432 = vrcp.pop %v1411
      %v1433 = vrcp.pop %v1414
      %v1434 = vrcp.pop %v1417
      %1436 = vset.pattern.permute.xlu0 32
      %1437 = vperm.xlu0 %1436, %v1419
      %v1438 = vpop.permute.xlu0 %1437
      %1441 = vset.pattern.permute.xlu0 32
      %1442 = vperm.xlu0 %1441, %v1420
      %v1443 = vpop.permute.xlu0 %1442
      %1446 = vset.pattern.permute.xlu0 32
      %1447 = vperm.xlu0 %1446, %v1421
      %v1448 = vpop.permute.xlu0 %1447
      %1451 = vset.pattern.permute.xlu0 32
      %1452 = vperm.xlu0 %1451, %v1422
      %v1453 = vpop.permute.xlu0 %1452
      %1456 = vset.pattern.permute.xlu0 32
      %1457 = vperm.xlu0 %1456, %v1423
      %v1458 = vpop.permute.xlu0 %1457
      %1461 = vset.pattern.permute.xlu0 32
      %1462 = vperm.xlu0 %1461, %v1424
      %v1463 = vpop.permute.xlu0 %1462
      %1466 = vset.pattern.permute.xlu0 32
      %1467 = vperm.xlu0 %1466, %v1425
      %v1468 = vpop.permute.xlu0 %1467
      %1471 = vset.pattern.permute.xlu0 32
      %1472 = vperm.xlu0 %1471, %v1426
      %v1473 = vpop.permute.xlu0 %1472
      %1476 = vset.pattern.permute.xlu0 32
      %1477 = vperm.xlu0 %1476, %v1427
      %v1478 = vpop.permute.xlu0 %1477
      %1481 = vset.pattern.permute.xlu0 32
      %1482 = vperm.xlu0 %1481, %v1428
      %v1483 = vpop.permute.xlu0 %1482
      %1486 = vset.pattern.permute.xlu0 32
      %1487 = vperm.xlu0 %1486, %v1429
      %v1488 = vpop.permute.xlu0 %1487
      %1491 = vset.pattern.permute.xlu0 32
      %1492 = vperm.xlu0 %1491, %v1430
      %v1493 = vpop.permute.xlu0 %1492
      %1496 = vset.pattern.permute.xlu0 32
      %1497 = vperm.xlu0 %1496, %v1431
      %v1498 = vpop.permute.xlu0 %1497
      %1501 = vset.pattern.permute.xlu0 32
      %1502 = vperm.xlu0 %1501, %v1432
      %v1503 = vpop.permute.xlu0 %1502
      %1506 = vset.pattern.permute.xlu0 32
      %1507 = vperm.xlu0 %1506, %v1433
      %v1508 = vpop.permute.xlu0 %1507
      %1511 = vset.pattern.permute.xlu0 32
      %1512 = vperm.xlu0 %1511, %v1434
      %v1513 = vpop.permute.xlu0 %1512
      %v1515 = vmul.f32 %v1355, %v1438
      %v1516 = vmul.f32 %v1358, %v1443
      %v1517 = vmul.f32 %v1361, %v1448
      %v1518 = vmul.f32 %v1364, %v1453
      %v1519 = vmul.f32 %v1367, %v1458
      %v1520 = vmul.f32 %v1370, %v1463
      %v1521 = vmul.f32 %v1373, %v1468
      %v1522 = vmul.f32 %v1376, %v1473
      %v1523 = vmul.f32 %v1396, %v1478
      %v1524 = vmul.f32 %v1399, %v1483
      %v1525 = vmul.f32 %v1402, %v1488
      %v1526 = vmul.f32 %v1405, %v1493
      %v1527 = vmul.f32 %v1408, %v1498
      %v1528 = vmul.f32 %v1411, %v1503
      %v1529 = vmul.f32 %v1414, %v1508
      %v1530 = vmul.f32 %v1417, %v1513
      %1531 = vst.msk [vmem:[%s254] sm:$0xff] %vm279, %v1515
      %1532 = vst.msk [vmem:[%s254 + $0x8] sm:$0xff] %vm279, %v1516
      %1533 = vst.msk [vmem:[%s254 + $0x10] sm:$0xff] %vm279, %v1517
      %1534 = vst.msk [vmem:[%s254 + $0x18] sm:$0xff] %vm279, %v1518
      %1535 = vst.msk [vmem:[%s254 + $0x20] sm:$0xff] %vm279, %v1519
      %1536 = vst.msk [vmem:[%s254 + $0x28] sm:$0xff] %vm279, %v1520
      %1537 = vst.msk [vmem:[%s254 + $0x30] sm:$0xff] %vm279, %v1521
      %1538 = vst.msk [vmem:[%s254 + $0x38] sm:$0xff] %vm279, %v1522
      %1539 = vst.msk [vmem:[%s254 + $0x40] sm:$0xff] %vm279, %v1523
      %1540 = vst.msk [vmem:[%s254 + $0x48] sm:$0xff] %vm279, %v1524
      %1541 = vst.msk [vmem:[%s254 + $0x50] sm:$0xff] %vm279, %v1525
      %1542 = vst.msk [vmem:[%s254 + $0x58] sm:$0xff] %vm279, %v1526
      %1543 = vst.msk [vmem:[%s254 + $0x60] sm:$0xff] %vm279, %v1527
      %1544 = vst.msk [vmem:[%s254 + $0x68] sm:$0xff] %vm279, %v1528
      %1545 = vst.msk [vmem:[%s254 + $0x70] sm:$0xff] %vm279, %v1529
      %1546 = vst.msk [vmem:[%s254 + $0x78] sm:$0xff] %vm279, %v1530
      %s1547 = smul.u32 2, %s15
      %p1548 = scmp.lt.s32.totalorder %s1547, 3
      %s1549 = scalar_select %p1548, %s1547, 3
      %s1550 = smul.addr %s1549, 8
      %s1551 = smul.addr %s1550, 8
      %s1552 = scalar_lea.vmem %s4, %s1551
      // Predicated region
      $region37: #{tpu_custom_call.1} parent=35 // pred_check
        %p1553 = pneg %p132
      $region38: #{tpu_custom_call.1} parent=35 // pred_check_branch
        %1555 = sbr.rel (%p1553) target = $region40
      $region39: #{tpu_custom_call.1} parent=35 // pred_region
        %s1556 = smul.u32 2, %s15
      $region40: #{tpu_custom_call.1} parent=35 // pred_fallthru
        _
    $region36: #{tpu_custom_call.1} parent=5 // pred_fallthru
      _
    %p1557 = scmp.le.s32.totalorder 2, %s10
    // Predicated region
    $region41: #{tpu_custom_call.1} parent=5 // pred_check
      %p1558 = pneg %p1557
    $region42: #{tpu_custom_call.1} parent=5 // pred_check_branch
      %1560 = sbr.rel (%p1558) target = $region44
    $region43: #{tpu_custom_call.1} parent=5 // pred_region
      %s1561 = ssub.s32 %s10, 2
      // Predicated region
      $region45: #{tpu_custom_call.1} parent=43 // pred_check
        %p1562 = pneg %p138
      $region46: #{tpu_custom_call.1} parent=43 // pred_check_branch
        %1564 = sbr.rel (%p1562) target = $region48
      $region47: #{tpu_custom_call.1} parent=43 // pred_region
        %s1565 = smul.u32 2, %s16
        %p1566 = scmp.lt.s32.totalorder %s1565, 3
        %s1567 = scalar_select %p1566, %s1565, 3
        %s1568 = smul.addr %s1567, 8
        %s1569 = smul.addr %s1568, 8
        %s1570 = scalar_lea.vmem %s4, %s1569
      $region48: #{tpu_custom_call.1} parent=43 // pred_fallthru
        _
    $region44: #{tpu_custom_call.1} parent=5 // pred_fallthru
      _
  $region6: #{tpu_custom_call.1} parent=0 // loop_footer
    %s14 = sadd.s32 1, %s10
  $region7: #{tpu_custom_call.1} parent=0 // loop_footer_branch
    %9 = sbr.rel target = $region3
  $region8: #{tpu_custom_call.1} parent=0 // loop_exit
    _

</llo_original>
